<compile_context>
chip_gen: v7x
topology: tpu7x:2x2x1
jax: 0.10.0
libtpu: 0.0.40
codegen_flags: <defaults>
</compile_context>

<pallas_src>
import math
from functools import partial

import jax
import jax.numpy as jnp
from jax import lax
from jax.experimental import pallas as pl
from jax.experimental.pallas import tpu as pltpu

_TAIL = 8  # sublane-aligned conv-state carry; requires d_conv - 1 <= _TAIL


# ----------------------------------------------------------------------------
# helpers (traced inside kernels)
# ----------------------------------------------------------------------------
def _layer_norm_f32(x, w, b, eps):
    mean = jnp.mean(x, axis=-1, keepdims=True)
    cen = x - mean
    var = jnp.mean(cen * cen, axis=-1, keepdims=True)
    return cen * lax.rsqrt(var + eps) * w + b


def _transpose_via_mxu(m, eye):
    # (T, C) -> (C, T) expressed as a trans_a matmul against the identity:
    # robust Mosaic lowering path (MXU), avoids a small-value relayout.
    return lax.dot_general(m, eye,
                           dimension_numbers=(((0,), (0,)), ((), ())),
                           preferred_element_type=jnp.float32)


# ----------------------------------------------------------------------------
# VMEM sizing / tile selection
# ----------------------------------------------------------------------------
def _layer_vmem_bytes(l_t, d_model, d_inner, d_state, dt_rank, d_conv, act_bytes):
    # 5 sequence blocks (hid, res, kv, out_hid, out_res), double-buffered.
    blocks = 5 * 2 * l_t * d_model * act_bytes
    w_bf16 = (2 * d_model * d_inner          # in_proj x + z
              + d_model * dt_rank + dt_rank * d_inner
              + d_model * 2 * d_state
              + d_inner * d_model) * 2
    w_f32 = (d_conv * d_inner + 3 * d_inner + 2 * d_model
             + d_state * d_inner) * 4
    weights = 2 * (w_bf16 + w_f32)           # double-buffered (constant blocks)
    scratch = ((l_t + _TAIL) * d_inner       # conv input + carried tail
               + 3 * l_t * d_inner           # x (post conv), dt, y
               + l_t * 2 * d_state           # B | C
               + d_state * d_inner) * 4      # SSM state
    return blocks + weights + scratch


def _pick_l_tile(L, d_model, d_inner, d_state, dt_rank, d_conv, act_bytes,
                 budget=40 << 20):
    assert L % 8 == 0, "TODO(synk): pad/mask ragged sequence lengths"
    cands = [c for c in (1024, 512, 256, 128, 64, 32, 16, 8)
             if c <= L and L % c == 0]
    for c in cands:
        if _layer_vmem_bytes(c, d_model, d_inner, d_state, dt_rank, d_conv,
                             act_bytes) <= budget:
            return c
    return cands[-1] if cands else 8


# ----------------------------------------------------------------------------
# Fused per-layer kernel: add+LN -> MambaQK mixer
#   grid = (batch "parallel", sequence tile "arbitrary")
# ----------------------------------------------------------------------------
def _mamba_qk_layer_kernel(
    # inputs
    hid_ref, res_ref, kv_ref,
    nw_ref, nb_ref,
    w_in_x_ref, w_in_z_ref,
    w_conv_ref, b_conv_ref,
    w_x_dt_ref, w_x_bc_ref, w_dt_ref, b_dt_ref,
    A_T_ref, D_ref, w_out_ref,
    # outputs
    new_hid_ref, new_res_ref,
    # scratch (VMEM; xext_s / h_s carry state across sequence tiles)
    xext_s, xs_s, dt_s, bc_s, y_s, h_s,
    *, d_inner, d_state, d_conv, eps, chunk, l_tile):

    l = pl.program_id(1)

    # ---- per-batch-item state init (first sequence tile) ---------------------
    @pl.when(l == 0)
    def _():
        h_s[...] = jnp.zeros_like(h_s)
        xext_s[0:_TAIL, :] = jnp.zeros((_TAIL, d_inner), jnp.float32)

    # ---- residual add + LayerNorm (f32 math) ---------------------------------
    res = hid_ref[0].astype(jnp.float32) + res_ref[0].astype(jnp.float32)   # (Lt, D)
    new_res_ref[0] = res.astype(new_res_ref.dtype)
    q_n = _layer_norm_f32(res, nw_ref[...].astype(jnp.float32),
                          nb_ref[...].astype(jnp.float32), eps)
    q_bf = q_n.astype(jnp.bfloat16)                   # bf16 into the MXU, f32 acc
    kv_bf = kv_ref[0].astype(jnp.bfloat16)

    # ---- query path: x half of in_proj (z half deferred to the epilogue) -----
    x_pre = jnp.dot(q_bf, w_in_x_ref[...], preferred_element_type=jnp.float32)

    # ---- streaming causal depthwise conv + SiLU -------------------------------
    # xext rows [0:_TAIL] hold the previous tile's last pre-conv rows (zero at l==0).
    xext_s[_TAIL:_TAIL + l_tile, :] = x_pre
    w_conv = w_conv_ref[...].astype(jnp.float32)                            # (K, Din)
    acc = x_pre * w_conv[d_conv - 1:d_conv, :] + b_conv_ref[...].astype(jnp.float32)
    for k in range(d_conv - 1):          # static unroll; kernel width is tiny
        s = d_conv - 1 - k               # tap k multiplies x[t - s]
        acc = acc + xext_s[_TAIL - s:_TAIL - s + l_tile, :] * w_conv[k:k + 1, :]
    x = acc * jax.nn.sigmoid(acc)                                           # SiLU
    xs_s[...] = x
    # carry the last _TAIL pre-conv rows into the next sequence tile
    xext_s[0:_TAIL, :] = xext_s[l_tile:l_tile + _TAIL, :]

    # ---- kv path: low-rank dt (+ softplus) and B|C into their own slabs -------
    dt_low = jnp.dot(kv_bf, w_x_dt_ref[...], preferred_element_type=jnp.float32)
    dt = jnp.dot(dt_low.astype(jnp.bfloat16), w_dt_ref[...],
                 preferred_element_type=jnp.float32) + b_dt_ref[...].astype(jnp.float32)
    dt_s[...] = jax.nn.softplus(dt)                                         # (Lt, Din)
    bc_s[...] = jnp.dot(kv_bf, w_x_bc_ref[...],
                        preferred_element_type=jnp.float32)                 # (Lt, 2N)

    A_T = A_T_ref[...].astype(jnp.float32)                                  # (N, Din)
    ii = lax.broadcasted_iota(jnp.int32, (chunk, chunk), 0)
    jj = lax.broadcasted_iota(jnp.int32, (chunk, chunk), 1)
    eye_c = (ii == jj).astype(jnp.float32)                                  # (T, T)

    # ---- chunked selective scan (state carried in h_s across tiles) ----------
    @pl.loop(0, l_tile // chunk)
    def _scan_chunk(c):
        off = pl.multiple_of(c * chunk, chunk)
        dt_c = dt_s[pl.ds(off, chunk), :]                                   # (T, Din)
        x_c = xs_s[pl.ds(off, chunk), :]                                    # (T, Din)
        dtx_c = dt_c * x_c
        # whole-chunk exp, off the recurrence critical path (EUP runs ahead)
        dA = jnp.exp(dt_c[:, None, :] * A_T[None, :, :])                    # (T, N, Din)
        # single tiny MXU transpose per chunk (B and C together), in the preamble
        bc_c = bc_s[pl.ds(off, chunk), :]                                   # (T, 2N)
        bcT = _transpose_via_mxu(bc_c, eye_c)                               # (2N, T)
        BT_c = bcT[0:d_state, :]
        CT_c = bcT[d_state:2 * d_state, :]
        h = h_s[...]                                                        # (N, Din)
        rows = []
        for k in range(chunk):           # static unroll over the chunk
            h = dA[k] * h + dtx_c[k:k + 1, :] * BT_c[:, k:k + 1]
            rows.append(jnp.sum(CT_c[:, k:k + 1] * h, axis=0, keepdims=True))
        h_s[...] = h
        y_s[pl.ds(off, chunk), :] = jnp.concatenate(rows, axis=0)           # full-tile store

    # ---- epilogue: D skip, SiLU(z) gate (z computed late), out_proj ----------
    z = jnp.dot(q_bf, w_in_z_ref[...], preferred_element_type=jnp.float32)
    y = y_s[...] + xs_s[...] * D_ref[...].astype(jnp.float32)
    y = y * (z * jax.nn.sigmoid(z))
    out = jnp.dot(y.astype(jnp.bfloat16), w_out_ref[...],
                  preferred_element_type=jnp.float32)                       # (Lt, D)
    new_hid_ref[0] = out.astype(new_hid_ref.dtype)


def mamba_qk_layer(p, hidden, residual, kv, *, d_inner, d_state, dt_rank,
                   d_conv, eps=1e-5):
    B, L, D = hidden.shape
    assert d_conv - 1 <= _TAIL
    act_bytes = hidden.dtype.itemsize
    l_tile = _pick_l_tile(L, D, d_inner, d_state, dt_rank, d_conv, act_bytes)
    n_lt = L // l_tile
    chunk = 16 if l_tile % 16 == 0 else 8
    est = _layer_vmem_bytes(l_tile, D, d_inner, d_state, dt_rank, d_conv, act_bytes)
    vmem_limit = int(max(32 << 20, min(100 << 20, int(est * 1.25) + (2 << 20))))

    kernel = partial(_mamba_qk_layer_kernel, d_inner=d_inner, d_state=d_state,
                     d_conv=d_conv, eps=eps, chunk=chunk, l_tile=l_tile)

    seq_spec = pl.BlockSpec((1, l_tile, D), lambda b, l: (b, l, 0))

    def rep(shape):
        # constant weights across the whole grid (Pallas skips the re-DMA since
        # the block index never changes).
        return pl.BlockSpec(shape, lambda b, l: (0, 0))

    new_hidden, new_residual = pl.pallas_call(
        kernel,
        out_shape=(jax.ShapeDtypeStruct((B, L, D), hidden.dtype),
                   jax.ShapeDtypeStruct((B, L, D), hidden.dtype)),
        grid=(B, n_lt),
        in_specs=[
            seq_spec, seq_spec, seq_spec,                  # hidden, residual, kv
            rep((1, D)), rep((1, D)),                      # LayerNorm w, b
            rep((D, d_inner)), rep((D, d_inner)),          # in_proj x / z halves (bf16)
            rep((d_conv, d_inner)), rep((1, d_inner)),     # conv w, b
            rep((D, dt_rank)), rep((D, 2 * d_state)),      # x_proj dt / (B|C) slabs (bf16)
            rep((dt_rank, d_inner)), rep((1, d_inner)),    # dt_proj w (bf16), b
            rep((d_state, d_inner)), rep((1, d_inner)),    # A^T, D skip
            rep((d_inner, D)),                             # out_proj (bf16)
        ],
        out_specs=(seq_spec, seq_spec),
        scratch_shapes=[
            pltpu.VMEM((l_tile + _TAIL, d_inner), jnp.float32),   # conv input + carried tail
            pltpu.VMEM((l_tile, d_inner), jnp.float32),           # conv+SiLU output x
            pltpu.VMEM((l_tile, d_inner), jnp.float32),           # softplus(dt)
            pltpu.VMEM((l_tile, 2 * d_state), jnp.float32),       # B | C
            pltpu.VMEM((l_tile, d_inner), jnp.float32),           # scan output y
            pltpu.VMEM((d_state, d_inner), jnp.float32),          # SSM state h (carried)
        ],
        compiler_params=pltpu.CompilerParams(
            dimension_semantics=("parallel", "arbitrary"),
            vmem_limit_bytes=vmem_limit),
    )(hidden, residual, kv,
      p["norm_w"].reshape(1, D), p["norm_b"].reshape(1, D),
      p["in_proj_x_w"], p["in_proj_z_w"],
      p["conv_w"], p["conv_b"].reshape(1, d_inner),
      p["x_proj_dt_w"], p["x_proj_bc_w"],
      p["dt_proj_w"], p["dt_proj_b"].reshape(1, d_inner),
      p["A_T"], p["D_vec"].reshape(1, d_inner),
      p["out_proj_w"])
    return new_hidden, new_residual


# ----------------------------------------------------------------------------
# Final fused residual-add + LayerNorm (sequence tiled, fully parallel grid)
# ----------------------------------------------------------------------------
def _final_add_norm_kernel(x_ref, r_ref, w_ref, b_ref, y_ref, *, eps):
    xf = x_ref[0].astype(jnp.float32) + r_ref[0].astype(jnp.float32)
    y_ref[0] = _layer_norm_f32(xf, w_ref[...].astype(jnp.float32),
                               b_ref[...].astype(jnp.float32), eps).astype(y_ref.dtype)


def final_add_norm(x, r, w, b, eps=1e-5):
    B, L, D = x.shape
    assert L % 8 == 0, "TODO(synk): pad/mask ragged sequence lengths"
    act_bytes = x.dtype.itemsize
    l_tile = 8
    for c in (1024, 512, 256, 128, 64, 32, 16, 8):
        if c <= L and L % c == 0 and 6 * c * D * act_bytes <= (24 << 20):
            l_tile = c
            break
    n_lt = L // l_tile
    seq_spec = pl.BlockSpec((1, l_tile, D), lambda b, l: (b, l, 0))
    return pl.pallas_call(
        partial(_final_add_norm_kernel, eps=eps),
        out_shape=jax.ShapeDtypeStruct((B, L, D), x.dtype),
        grid=(B, n_lt),
        in_specs=[seq_spec, seq_spec,
                  pl.BlockSpec((1, D), lambda b, l: (0, 0)),
                  pl.BlockSpec((1, D), lambda b, l: (0, 0))],
        out_specs=seq_spec,
        compiler_params=pltpu.CompilerParams(
            dimension_semantics=("parallel", "parallel")),
    )(x, r, w.reshape(1, D), b.reshape(1, D))


# ----------------------------------------------------------------------------
# Parameter construction (deterministic, synthetic)
# ----------------------------------------------------------------------------
def init_params(key, d_model, n_layer, d_inner, d_state, d_conv, dt_rank):
    layers = []
    keys = jax.random.split(key, n_layer)
    scale = 0.02
    for li in range(n_layer):
        ks = jax.random.split(keys[li], 5)
        A_log = jnp.log(jnp.broadcast_to(
            jnp.arange(1, d_state + 1, dtype=jnp.float32), (d_inner, d_state)))
        in_proj = scale * jax.random.normal(ks[0], (d_model, 2 * d_inner), jnp.float32)
        x_proj = scale * jax.random.normal(ks[2], (d_model, dt_rank + 2 * d_state),
                                           jnp.float32)
        layers.append(dict(
            norm_w=jnp.ones((d_model,), jnp.float32),
            norm_b=jnp.zeros((d_model,), jnp.float32),
            # in_proj split into x / z halves; matmul weights stored bf16 so the
            # MXU sees native bf16 operands (f32 accumulate in-kernel).
            in_proj_x_w=in_proj[:, :d_inner].astype(jnp.bfloat16),
            in_proj_z_w=in_proj[:, d_inner:].astype(jnp.bfloat16),
            # depthwise conv weight stored (kernel, channels); w[K-1] multiplies the
            # current sample, w[0] the oldest (matches Conv1d with padding=K-1).
            conv_w=scale * jax.random.normal(ks[1], (d_conv, d_inner), jnp.float32),
            conv_b=jnp.zeros((d_inner,), jnp.float32),
            # x_proj split into dt / (B|C) slabs -> no unaligned lane slicing in-kernel.
            x_proj_dt_w=x_proj[:, :dt_rank].astype(jnp.bfloat16),
            x_proj_bc_w=x_proj[:, dt_rank:].astype(jnp.bfloat16),
            dt_proj_w=((dt_rank ** -0.5) *
                       jax.random.normal(ks[3], (dt_rank, d_inner), jnp.float32)
                       ).astype(jnp.bfloat16),
            dt_proj_b=jnp.full((d_inner,), math.log(math.expm1(0.01)), jnp.float32),
            # A = -exp(A_log), stored transposed (d_state, d_inner), f32.
            A_T=(-jnp.exp(A_log)).T,
            D_vec=jnp.ones((d_inner,), jnp.float32),
            # out_proj rescaled by 1/sqrt(n_layer) (rescale_prenorm_residual)
            out_proj_w=((scale / math.sqrt(n_layer)) *
                        jax.random.normal(ks[4], (d_inner, d_model), jnp.float32)
                        ).astype(jnp.bfloat16),
        ))
    return dict(layers=layers,
                norm_f_w=jnp.ones((d_model,), jnp.float32),
                norm_f_b=jnp.zeros((d_model,), jnp.float32))


# ----------------------------------------------------------------------------
# Forward pass
# ----------------------------------------------------------------------------
def mixer_ts_decoder_forward(params, q, kv, *, d_inner, d_state, dt_rank,
                             d_conv, eps=1e-5):
    layers = params["layers"]
    kv_list = kv if isinstance(kv, (list, tuple)) else [kv] * len(layers)
    hidden = q
    residual = jnp.zeros_like(q)   # equivalent to residual=None on the first layer
    for p, kv_i in zip(layers, kv_list):
        hidden, residual = mamba_qk_layer(
            p, hidden, residual, kv_i,
            d_inner=d_inner, d_state=d_state, dt_rank=dt_rank,
            d_conv=d_conv, eps=eps)
    return final_add_norm(hidden, residual, params["norm_f_w"],
                          params["norm_f_b"], eps)


# ----------------------------------------------------------------------------
if __name__ == "__main__":
    d_model = 32
    n_layer = 2
    batch = 2
    seqlen = 8
    d_inner = 2 * d_model          # expand = 2
    d_state = 8
    d_conv = 4
    dt_rank = max(1, d_model // 16)

    key = jax.random.PRNGKey(0)
    kq, kkv, kp = jax.random.split(key, 3)
    q = jax.random.normal(kq, (batch, seqlen, d_model), jnp.float32)
    kv = jax.random.normal(kkv, (batch, seqlen, d_model), jnp.float32)
    params = init_params(kp, d_model, n_layer, d_inner, d_state, d_conv, dt_rank)

    fwd = jax.jit(partial(mixer_ts_decoder_forward, d_inner=d_inner,
                          d_state=d_state, dt_rank=dt_rank, d_conv=d_conv))
    out = jax.block_until_ready(fwd(params, q, kv))
    assert out.shape == (batch, seqlen, d_model)
    assert bool(jnp.all(jnp.isfinite(out)))
    print("KERNEL_OK")
</pallas_src>

<mosaic_0001>
module attributes {stable_mosaic.version = 11 : i64} {
  func.func @_final_add_norm_kernel(%arg0: i32, %arg1: i32, %arg2: memref<1x8x32xf32, #tpu.memory_space<vmem>>, %arg3: memref<1x8x32xf32, #tpu.memory_space<vmem>>, %arg4: memref<1x32xf32, #tpu.memory_space<vmem>>, %arg5: memref<1x32xf32, #tpu.memory_space<vmem>>, %arg6: memref<1x8x32xf32, #tpu.memory_space<vmem>>) attributes {dimension_semantics = [#tpu.dimension_semantics<parallel>, #tpu.dimension_semantics<parallel>], iteration_bounds = array<i64: 2, 1>, scalar_prefetch = 0 : i64, scratch_operands = 0 : i64, tpu.core_type = #tpu.core_type<tc>, window_params = [{transform_indices = @transform_0, window_bounds = array<i64: 1, 8, 32>}, {transform_indices = @transform_1, window_bounds = array<i64: 1, 8, 32>}, {pipeline_mode = #tpu.pipeline_mode<synchronous>, transform_indices = @transform_2, window_bounds = array<i64: 1, 32>}, {pipeline_mode = #tpu.pipeline_mode<synchronous>, transform_indices = @transform_3, window_bounds = array<i64: 1, 32>}, {transform_indices = @transform_4, window_bounds = array<i64: 1, 8, 32>}]} {
    %c0 = arith.constant 0 : index
    %c0_0 = arith.constant 0 : index
    %c0_1 = arith.constant 0 : index
    %0 = vector.load %arg2[%c0, %c0_0, %c0_1] : memref<1x8x32xf32, #tpu.memory_space<vmem>>, vector<1x8x32xf32>
    %1 = vector.shape_cast %0 : vector<1x8x32xf32> to vector<8x32xf32>
    %c0_2 = arith.constant 0 : index
    %c0_3 = arith.constant 0 : index
    %c0_4 = arith.constant 0 : index
    %2 = vector.load %arg3[%c0_2, %c0_3, %c0_4] : memref<1x8x32xf32, #tpu.memory_space<vmem>>, vector<1x8x32xf32>
    %3 = vector.shape_cast %2 : vector<1x8x32xf32> to vector<8x32xf32>
    %4 = arith.addf %1, %3 : vector<8x32xf32>
    %c0_5 = arith.constant 0 : index
    %c0_6 = arith.constant 0 : index
    %5 = vector.load %arg4[%c0_5, %c0_6] : memref<1x32xf32, #tpu.memory_space<vmem>>, vector<1x32xf32>
    %c0_7 = arith.constant 0 : index
    %c0_8 = arith.constant 0 : index
    %6 = vector.load %arg5[%c0_7, %c0_8] : memref<1x32xf32, #tpu.memory_space<vmem>>, vector<1x32xf32>
    %cst = arith.constant dense<0.000000e+00> : vector<8xf32>
    %7 = vector.multi_reduction <add>, %4, %cst [1] : vector<8x32xf32> to vector<8xf32>
    %8 = vector.shape_cast %7 : vector<8xf32> to vector<8x1xf32>
    %cst_9 = arith.constant 3.200000e+01 : f32
    %9 = vector.broadcast %cst_9 : f32 to vector<8x1xf32>
    %10 = arith.divf %8, %9 : vector<8x1xf32>
    %11 = vector.broadcast %10 : vector<8x1xf32> to vector<8x32xf32>
    %12 = arith.subf %4, %11 : vector<8x32xf32>
    %13 = arith.mulf %12, %12 : vector<8x32xf32>
    %cst_10 = arith.constant dense<0.000000e+00> : vector<8xf32>
    %14 = vector.multi_reduction <add>, %13, %cst_10 [1] : vector<8x32xf32> to vector<8xf32>
    %15 = vector.shape_cast %14 : vector<8xf32> to vector<8x1xf32>
    %cst_11 = arith.constant 3.200000e+01 : f32
    %16 = vector.broadcast %cst_11 : f32 to vector<8x1xf32>
    %17 = arith.divf %15, %16 : vector<8x1xf32>
    %cst_12 = arith.constant 9.99999974E-6 : f32
    %18 = vector.broadcast %cst_12 : f32 to vector<8x1xf32>
    %19 = arith.addf %17, %18 : vector<8x1xf32>
    %20 = math.rsqrt %19 : vector<8x1xf32>
    %21 = vector.broadcast %20 : vector<8x1xf32> to vector<8x32xf32>
    %22 = arith.mulf %12, %21 : vector<8x32xf32>
    %23 = vector.broadcast %5 : vector<1x32xf32> to vector<8x32xf32>
    %24 = arith.mulf %22, %23 : vector<8x32xf32>
    %25 = vector.broadcast %6 : vector<1x32xf32> to vector<8x32xf32>
    %26 = arith.addf %24, %25 : vector<8x32xf32>
    %c0_13 = arith.constant 0 : index
    %c0_14 = arith.constant 0 : index
    %c0_15 = arith.constant 0 : index
    %27 = vector.load %arg6[%c0_13, %c0_14, %c0_15] : memref<1x8x32xf32, #tpu.memory_space<vmem>>, vector<1x8x32xf32>
    %28 = vector.shape_cast %27 : vector<1x8x32xf32> to vector<8x32xf32>
    %29 = vector.shape_cast %26 : vector<8x32xf32> to vector<1x8x32xf32>
    tpu.vector_store %arg6[%c0_13, %c0_14, %c0_15], %29 {strides = array<i32>} : memref<1x8x32xf32, #tpu.memory_space<vmem>>, vector<1x8x32xf32>,
    return
  }
  func.func @transform_0(%arg0: i32, %arg1: i32) -> (i32, i32, i32) {
    %c0_i32 = arith.constant 0 : i32
    %c0_i32_0 = arith.constant 0 : i32
    return %arg0, %arg1, %c0_i32 : i32, i32, i32
  }
  func.func @transform_1(%arg0: i32, %arg1: i32) -> (i32, i32, i32) {
    %c0_i32 = arith.constant 0 : i32
    %c0_i32_0 = arith.constant 0 : i32
    return %arg0, %arg1, %c0_i32 : i32, i32, i32
  }
  func.func @transform_2(%arg0: i32, %arg1: i32) -> (i32, i32) {
    %c0_i32 = arith.constant 0 : i32
    %c0_i32_0 = arith.constant 0 : i32
    %c0_i32_1 = arith.constant 0 : i32
    return %c0_i32, %c0_i32_0 : i32, i32
  }
  func.func @transform_3(%arg0: i32, %arg1: i32) -> (i32, i32) {
    %c0_i32 = arith.constant 0 : i32
    %c0_i32_0 = arith.constant 0 : i32
    %c0_i32_1 = arith.constant 0 : i32
    return %c0_i32, %c0_i32_0 : i32, i32
  }
  func.func @transform_4(%arg0: i32, %arg1: i32) -> (i32, i32, i32) {
    %c0_i32 = arith.constant 0 : i32
    %c0_i32_0 = arith.constant 0 : i32
    return %arg0, %arg1, %c0_i32 : i32, i32, i32
  }
}

module attributes {stable_mosaic.version = 11 : i64} {
  func.func @_mamba_qk_layer_kernel(%arg0: i32, %arg1: i32, %arg2: memref<1x8x32xf32, #tpu.memory_space<vmem>>, %arg3: memref<1x8x32xf32, #tpu.memory_space<vmem>>, %arg4: memref<1x8x32xf32, #tpu.memory_space<vmem>>, %arg5: memref<1x32xf32, #tpu.memory_space<vmem>>, %arg6: memref<1x32xf32, #tpu.memory_space<vmem>>, %arg7: memref<32x64xbf16, #tpu.memory_space<vmem>>, %arg8: memref<32x64xbf16, #tpu.memory_space<vmem>>, %arg9: memref<4x64xf32, #tpu.memory_space<vmem>>, %arg10: memref<1x64xf32, #tpu.memory_space<vmem>>, %arg11: memref<32x2xbf16, #tpu.memory_space<vmem>>, %arg12: memref<32x16xbf16, #tpu.memory_space<vmem>>, %arg13: memref<2x64xbf16, #tpu.memory_space<vmem>>, %arg14: memref<1x64xf32, #tpu.memory_space<vmem>>, %arg15: memref<8x64xf32, #tpu.memory_space<vmem>>, %arg16: memref<1x64xf32, #tpu.memory_space<vmem>>, %arg17: memref<64x32xbf16, #tpu.memory_space<vmem>>, %arg18: memref<1x8x32xf32, #tpu.memory_space<vmem>>, %arg19: memref<1x8x32xf32, #tpu.memory_space<vmem>>, %arg20: memref<16x64xf32, #tpu.memory_space<vmem>>, %arg21: memref<8x64xf32, #tpu.memory_space<vmem>>, %arg22: memref<8x64xf32, #tpu.memory_space<vmem>>, %arg23: memref<8x16xf32, #tpu.memory_space<vmem>>, %arg24: memref<8x64xf32, #tpu.memory_space<vmem>>, %arg25: memref<8x64xf32, #tpu.memory_space<vmem>>) attributes {dimension_semantics = [#tpu.dimension_semantics<parallel>, #tpu.dimension_semantics<arbitrary>], iteration_bounds = array<i64: 2, 1>, scalar_prefetch = 0 : i64, scratch_operands = 6 : i64, tpu.core_type = #tpu.core_type<tc>, window_params = [{transform_indices = @transform_0, window_bounds = array<i64: 1, 8, 32>}, {transform_indices = @transform_1, window_bounds = array<i64: 1, 8, 32>}, {transform_indices = @transform_2, window_bounds = array<i64: 1, 8, 32>}, {pipeline_mode = #tpu.pipeline_mode<synchronous>, transform_indices = @transform_3, window_bounds = array<i64: 1, 32>}, {pipeline_mode = #tpu.pipeline_mode<synchronous>, transform_indices = @transform_4, window_bounds = array<i64: 1, 32>}, {pipeline_mode = #tpu.pipeline_mode<synchronous>, transform_indices = @transform_5, window_bounds = array<i64: 32, 64>}, {pipeline_mode = #tpu.pipeline_mode<synchronous>, transform_indices = @transform_6, window_bounds = array<i64: 32, 64>}, {pipeline_mode = #tpu.pipeline_mode<synchronous>, transform_indices = @transform_7, window_bounds = array<i64: 4, 64>}, {pipeline_mode = #tpu.pipeline_mode<synchronous>, transform_indices = @transform_8, window_bounds = array<i64: 1, 64>}, {pipeline_mode = #tpu.pipeline_mode<synchronous>, transform_indices = @transform_9, window_bounds = array<i64: 32, 2>}, {pipeline_mode = #tpu.pipeline_mode<synchronous>, transform_indices = @transform_10, window_bounds = array<i64: 32, 16>}, {pipeline_mode = #tpu.pipeline_mode<synchronous>, transform_indices = @transform_11, window_bounds = array<i64: 2, 64>}, {pipeline_mode = #tpu.pipeline_mode<synchronous>, transform_indices = @transform_12, window_bounds = array<i64: 1, 64>}, {pipeline_mode = #tpu.pipeline_mode<synchronous>, transform_indices = @transform_13, window_bounds = array<i64: 8, 64>}, {pipeline_mode = #tpu.pipeline_mode<synchronous>, transform_indices = @transform_14, window_bounds = array<i64: 1, 64>}, {pipeline_mode = #tpu.pipeline_mode<synchronous>, transform_indices = @transform_15, window_bounds = array<i64: 64, 32>}, {transform_indices = @transform_16, window_bounds = array<i64: 1, 8, 32>}, {transform_indices = @transform_17, window_bounds = array<i64: 1, 8, 32>}]} {
    %c0_i32 = arith.constant 0 : i32
    %0 = arith.cmpi eq, %arg1, %c0_i32 : i32
    %1 = arith.extui %0 : i1 to i32
    %c0_i32_0 = arith.constant 0 : i32
    %2 = arith.cmpi ne, %1, %c0_i32_0 : i32
    scf.if %2 {
      %cst_93 = arith.constant 0.000000e+00 : f32
      %261 = vector.broadcast %cst_93 : f32 to vector<8x64xf32>
      %c0_94 = arith.constant 0 : index
      %c0_95 = arith.constant 0 : index
      %262 = vector.load %arg25[%c0_94, %c0_95] : memref<8x64xf32, #tpu.memory_space<vmem>>, vector<8x64xf32>
      tpu.vector_store %arg25[%c0_94, %c0_95], %261 {strides = array<i32>} : memref<8x64xf32, #tpu.memory_space<vmem>>, vector<8x64xf32>,
      %cst_96 = arith.constant 0.000000e+00 : f32
      %263 = vector.broadcast %cst_96 : f32 to vector<8x64xf32>
      %c0_97 = arith.constant 0 : index
      %c0_98 = arith.constant 0 : index
      %264 = vector.load %arg20[%c0_97, %c0_98] : memref<16x64xf32, #tpu.memory_space<vmem>>, vector<8x64xf32>
      tpu.vector_store %arg20[%c0_97, %c0_98], %263 {strides = array<i32>} : memref<16x64xf32, #tpu.memory_space<vmem>>, vector<8x64xf32>,
    } else {
    }
    %c0 = arith.constant 0 : index
    %c0_1 = arith.constant 0 : index
    %c0_2 = arith.constant 0 : index
    %3 = vector.load %arg2[%c0, %c0_1, %c0_2] : memref<1x8x32xf32, #tpu.memory_space<vmem>>, vector<1x8x32xf32>
    %4 = vector.shape_cast %3 : vector<1x8x32xf32> to vector<8x32xf32>
    %c0_3 = arith.constant 0 : index
    %c0_4 = arith.constant 0 : index
    %c0_5 = arith.constant 0 : index
    %5 = vector.load %arg3[%c0_3, %c0_4, %c0_5] : memref<1x8x32xf32, #tpu.memory_space<vmem>>, vector<1x8x32xf32>
    %6 = vector.shape_cast %5 : vector<1x8x32xf32> to vector<8x32xf32>
    %7 = arith.addf %4, %6 : vector<8x32xf32>
    %c0_6 = arith.constant 0 : index
    %c0_7 = arith.constant 0 : index
    %c0_8 = arith.constant 0 : index
    %8 = vector.load %arg19[%c0_6, %c0_7, %c0_8] : memref<1x8x32xf32, #tpu.memory_space<vmem>>, vector<1x8x32xf32>
    %9 = vector.shape_cast %8 : vector<1x8x32xf32> to vector<8x32xf32>
    %10 = vector.shape_cast %7 : vector<8x32xf32> to vector<1x8x32xf32>
    tpu.vector_store %arg19[%c0_6, %c0_7, %c0_8], %10 {strides = array<i32>} : memref<1x8x32xf32, #tpu.memory_space<vmem>>, vector<1x8x32xf32>,
    %c0_9 = arith.constant 0 : index
    %c0_10 = arith.constant 0 : index
    %11 = vector.load %arg5[%c0_9, %c0_10] : memref<1x32xf32, #tpu.memory_space<vmem>>, vector<1x32xf32>
    %c0_11 = arith.constant 0 : index
    %c0_12 = arith.constant 0 : index
    %12 = vector.load %arg6[%c0_11, %c0_12] : memref<1x32xf32, #tpu.memory_space<vmem>>, vector<1x32xf32>
    %cst = arith.constant dense<0.000000e+00> : vector<8xf32>
    %13 = vector.multi_reduction <add>, %7, %cst [1] : vector<8x32xf32> to vector<8xf32>
    %14 = vector.shape_cast %13 : vector<8xf32> to vector<8x1xf32>
    %cst_13 = arith.constant 3.200000e+01 : f32
    %15 = vector.broadcast %cst_13 : f32 to vector<8x1xf32>
    %16 = arith.divf %14, %15 : vector<8x1xf32>
    %17 = vector.broadcast %16 : vector<8x1xf32> to vector<8x32xf32>
    %18 = arith.subf %7, %17 : vector<8x32xf32>
    %19 = arith.mulf %18, %18 : vector<8x32xf32>
    %cst_14 = arith.constant dense<0.000000e+00> : vector<8xf32>
    %20 = vector.multi_reduction <add>, %19, %cst_14 [1] : vector<8x32xf32> to vector<8xf32>
    %21 = vector.shape_cast %20 : vector<8xf32> to vector<8x1xf32>
    %cst_15 = arith.constant 3.200000e+01 : f32
    %22 = vector.broadcast %cst_15 : f32 to vector<8x1xf32>
    %23 = arith.divf %21, %22 : vector<8x1xf32>
    %cst_16 = arith.constant 9.99999974E-6 : f32
    %24 = vector.broadcast %cst_16 : f32 to vector<8x1xf32>
    %25 = arith.addf %23, %24 : vector<8x1xf32>
    %26 = math.rsqrt %25 : vector<8x1xf32>
    %27 = vector.broadcast %26 : vector<8x1xf32> to vector<8x32xf32>
    %28 = arith.mulf %18, %27 : vector<8x32xf32>
    %29 = vector.broadcast %11 : vector<1x32xf32> to vector<8x32xf32>
    %30 = arith.mulf %28, %29 : vector<8x32xf32>
    %31 = vector.broadcast %12 : vector<1x32xf32> to vector<8x32xf32>
    %32 = arith.addf %30, %31 : vector<8x32xf32>
    %33 = arith.truncf %32 : vector<8x32xf32> to vector<8x32xbf16>
    %c0_17 = arith.constant 0 : index
    %c0_18 = arith.constant 0 : index
    %c0_19 = arith.constant 0 : index
    %34 = vector.load %arg4[%c0_17, %c0_18, %c0_19] : memref<1x8x32xf32, #tpu.memory_space<vmem>>, vector<1x8x32xf32>
    %35 = vector.shape_cast %34 : vector<1x8x32xf32> to vector<8x32xf32>
    %36 = arith.truncf %35 : vector<8x32xf32> to vector<8x32xbf16>
    %c0_20 = arith.constant 0 : index
    %c0_21 = arith.constant 0 : index
    %37 = vector.load %arg7[%c0_20, %c0_21] : memref<32x64xbf16, #tpu.memory_space<vmem>>, vector<32x64xbf16>
    %cst_22 = arith.constant dense<0.000000e+00> : vector<8x64xf32>
    %38 = tpu.matmul %33, %37, %cst_22 {dimension_numbers = #tpu.dot_dimension_numbers<[1], [0], [0], [1], [0, 0, 1, 1], [], []>} : vector<8x32xbf16>, vector<32x64xbf16>, vector<8x64xf32> -> vector<8x64xf32>
    %c8 = arith.constant 8 : index
    %c0_23 = arith.constant 0 : index
    %39 = vector.load %arg20[%c8, %c0_23] : memref<16x64xf32, #tpu.memory_space<vmem>>, vector<8x64xf32>
    tpu.vector_store %arg20[%c8, %c0_23], %38 {strides = array<i32>} : memref<16x64xf32, #tpu.memory_space<vmem>>, vector<8x64xf32>,
    %c0_24 = arith.constant 0 : index
    %c0_25 = arith.constant 0 : index
    %40 = vector.load %arg9[%c0_24, %c0_25] : memref<4x64xf32, #tpu.memory_space<vmem>>, vector<4x64xf32>
    %41 = vector.extract_strided_slice %40 {offsets = [3, 0], sizes = [1, 64], strides = [1, 1]} : vector<4x64xf32> to vector<1x64xf32>
    %42 = vector.broadcast %41 : vector<1x64xf32> to vector<8x64xf32>
    %43 = arith.mulf %38, %42 : vector<8x64xf32>
    %c0_26 = arith.constant 0 : index
    %c0_27 = arith.constant 0 : index
    %44 = vector.load %arg10[%c0_26, %c0_27] : memref<1x64xf32, #tpu.memory_space<vmem>>, vector<1x64xf32>
    %45 = vector.broadcast %44 : vector<1x64xf32> to vector<8x64xf32>
    %46 = arith.addf %43, %45 : vector<8x64xf32>
    %c5 = arith.constant 5 : index
    %c0_28 = arith.constant 0 : index
    %47 = vector.load %arg20[%c5, %c0_28] : memref<16x64xf32, #tpu.memory_space<vmem>>, vector<8x64xf32>
    %48 = vector.extract_strided_slice %40 {offsets = [0, 0], sizes = [1, 64], strides = [1, 1]} : vector<4x64xf32> to vector<1x64xf32>
    %49 = vector.broadcast %48 : vector<1x64xf32> to vector<8x64xf32>
    %50 = arith.mulf %47, %49 : vector<8x64xf32>
    %51 = arith.addf %46, %50 : vector<8x64xf32>
    %c6 = arith.constant 6 : index
    %c0_29 = arith.constant 0 : index
    %52 = vector.load %arg20[%c6, %c0_29] : memref<16x64xf32, #tpu.memory_space<vmem>>, vector<8x64xf32>
    %53 = vector.extract_strided_slice %40 {offsets = [1, 0], sizes = [1, 64], strides = [1, 1]} : vector<4x64xf32> to vector<1x64xf32>
    %54 = vector.broadcast %53 : vector<1x64xf32> to vector<8x64xf32>
    %55 = arith.mulf %52, %54 : vector<8x64xf32>
    %56 = arith.addf %51, %55 : vector<8x64xf32>
    %c7 = arith.constant 7 : index
    %c0_30 = arith.constant 0 : index
    %57 = vector.load %arg20[%c7, %c0_30] : memref<16x64xf32, #tpu.memory_space<vmem>>, vector<8x64xf32>
    %58 = vector.extract_strided_slice %40 {offsets = [2, 0], sizes = [1, 64], strides = [1, 1]} : vector<4x64xf32> to vector<1x64xf32>
    %59 = vector.broadcast %58 : vector<1x64xf32> to vector<8x64xf32>
    %60 = arith.mulf %57, %59 : vector<8x64xf32>
    %61 = arith.addf %56, %60 : vector<8x64xf32>
    %62 = arith.negf %61 : vector<8x64xf32>
    %63 = math.exp %62 : vector<8x64xf32>
    %cst_31 = arith.constant 1.000000e+00 : f32
    %64 = vector.broadcast %cst_31 : f32 to vector<8x64xf32>
    %65 = arith.addf %64, %63 : vector<8x64xf32>
    %66 = arith.divf %64, %65 : vector<8x64xf32>
    %67 = arith.mulf %61, %66 : vector<8x64xf32>
    %c0_32 = arith.constant 0 : index
    %c0_33 = arith.constant 0 : index
    %68 = vector.load %arg21[%c0_32, %c0_33] : memref<8x64xf32, #tpu.memory_space<vmem>>, vector<8x64xf32>
    tpu.vector_store %arg21[%c0_32, %c0_33], %67 {strides = array<i32>} : memref<8x64xf32, #tpu.memory_space<vmem>>, vector<8x64xf32>,
    %c8_34 = arith.constant 8 : index
    %c0_35 = arith.constant 0 : index
    %69 = vector.load %arg20[%c8_34, %c0_35] : memref<16x64xf32, #tpu.memory_space<vmem>>, vector<8x64xf32>
    %c0_36 = arith.constant 0 : index
    %c0_37 = arith.constant 0 : index
    %70 = vector.load %arg20[%c0_36, %c0_37] : memref<16x64xf32, #tpu.memory_space<vmem>>, vector<8x64xf32>
    tpu.vector_store %arg20[%c0_36, %c0_37], %69 {strides = array<i32>} : memref<16x64xf32, #tpu.memory_space<vmem>>, vector<8x64xf32>,
    %c0_38 = arith.constant 0 : index
    %c0_39 = arith.constant 0 : index
    %71 = vector.load %arg11[%c0_38, %c0_39] : memref<32x2xbf16, #tpu.memory_space<vmem>>, vector<32x2xbf16>
    %cst_40 = arith.constant dense<0.000000e+00> : vector<8x2xf32>
    %72 = tpu.matmul %36, %71, %cst_40 {dimension_numbers = #tpu.dot_dimension_numbers<[1], [0], [0], [1], [0, 0, 1, 1], [], []>} : vector<8x32xbf16>, vector<32x2xbf16>, vector<8x2xf32> -> vector<8x2xf32>
    %73 = arith.truncf %72 : vector<8x2xf32> to vector<8x2xbf16>
    %c0_41 = arith.constant 0 : index
    %c0_42 = arith.constant 0 : index
    %74 = vector.load %arg13[%c0_41, %c0_42] : memref<2x64xbf16, #tpu.memory_space<vmem>>, vector<2x64xbf16>
    %cst_43 = arith.constant dense<0.000000e+00> : vector<8x64xf32>
    %75 = tpu.matmul %73, %74, %cst_43 {dimension_numbers = #tpu.dot_dimension_numbers<[1], [0], [0], [1], [0, 0, 1, 1], [], []>} : vector<8x2xbf16>, vector<2x64xbf16>, vector<8x64xf32> -> vector<8x64xf32>
    %c0_44 = arith.constant 0 : index
    %c0_45 = arith.constant 0 : index
    %76 = vector.load %arg14[%c0_44, %c0_45] : memref<1x64xf32, #tpu.memory_space<vmem>>, vector<1x64xf32>
    %77 = vector.broadcast %76 : vector<1x64xf32> to vector<8x64xf32>
    %78 = arith.addf %75, %77 : vector<8x64xf32>
    %cst_46 = arith.constant 0.000000e+00 : f32
    %79 = vector.broadcast %cst_46 : f32 to vector<8x64xf32>
    %80 = arith.maximumf %78, %79 : vector<8x64xf32>
    %81 = vector.broadcast %cst_46 : f32 to vector<8x64xf32>
    %82 = arith.subf %78, %81 : vector<8x64xf32>
    %83 = arith.cmpf one, %82, %82 : vector<8x64xf32>
    %84 = vector.broadcast %cst_46 : f32 to vector<8x64xf32>
    %85 = arith.addf %78, %84 : vector<8x64xf32>
    %86 = math.absf %82 : vector<8x64xf32>
    %cst_47 = arith.constant 0.000000e+00 : f32
    %87 = vector.broadcast %cst_47 : f32 to vector<8x64xf32>
    %88 = arith.subf %87, %86 : vector<8x64xf32>
    %89 = math.exp %88 : vector<8x64xf32>
    %90 = math.log1p %89 : vector<8x64xf32>
    %91 = arith.addf %80, %90 : vector<8x64xf32>
    %92 = arith.select %83, %85, %91 : vector<8x64xi1>, vector<8x64xf32>
    %c0_48 = arith.constant 0 : index
    %c0_49 = arith.constant 0 : index
    %93 = vector.load %arg22[%c0_48, %c0_49] : memref<8x64xf32, #tpu.memory_space<vmem>>, vector<8x64xf32>
    tpu.vector_store %arg22[%c0_48, %c0_49], %92 {strides = array<i32>} : memref<8x64xf32, #tpu.memory_space<vmem>>, vector<8x64xf32>,
    %c0_50 = arith.constant 0 : index
    %c0_51 = arith.constant 0 : index
    %94 = vector.load %arg12[%c0_50, %c0_51] : memref<32x16xbf16, #tpu.memory_space<vmem>>, vector<32x16xbf16>
    %cst_52 = arith.constant dense<0.000000e+00> : vector<8x16xf32>
    %95 = tpu.matmul %36, %94, %cst_52 {dimension_numbers = #tpu.dot_dimension_numbers<[1], [0], [0], [1], [0, 0, 1, 1], [], []>} : vector<8x32xbf16>, vector<32x16xbf16>, vector<8x16xf32> -> vector<8x16xf32>
    %c0_53 = arith.constant 0 : index
    %c0_54 = arith.constant 0 : index
    %96 = vector.load %arg23[%c0_53, %c0_54] : memref<8x16xf32, #tpu.memory_space<vmem>>, vector<8x16xf32>
    tpu.vector_store %arg23[%c0_53, %c0_54], %95 {strides = array<i32>} : memref<8x16xf32, #tpu.memory_space<vmem>>, vector<8x16xf32>,
    %c0_55 = arith.constant 0 : index
    %c0_56 = arith.constant 0 : index
    %97 = vector.load %arg15[%c0_55, %c0_56] : memref<8x64xf32, #tpu.memory_space<vmem>>, vector<8x64xf32>
    %98 = tpu.iota {dimensions = array<i32: 0>} : vector<8x8xi32>
    %99 = tpu.iota {dimensions = array<i32: 1>} : vector<8x8xi32>
    %100 = arith.cmpi eq, %98, %99 : vector<8x8xi32>
    %101 = arith.extui %100 : vector<8x8xi1> to vector<8x8xi32>
    %102 = arith.sitofp %101 : vector<8x8xi32> to vector<8x8xf32>
    %c0_i32_57 = arith.constant 0 : i32
    %c1_i32 = arith.constant 1 : i32
    %103 = arith.muli %c0_i32_57, %c1_i32 : i32
    %c0_i32_58 = arith.constant 0 : i32
    %104 = arith.addi %c0_i32_58, %103 : i32
    %c8_i32 = arith.constant 8 : i32
    %105 = arith.muli %104, %c8_i32 : i32
    %106 = tpu.assume_multiple %105, 8 : i32
    %107 = arith.index_cast %106 : i32 to index
    %c0_59 = arith.constant 0 : index
    %108 = vector.load %arg22[%107, %c0_59] : memref<8x64xf32, #tpu.memory_space<vmem>>, vector<8x64xf32>
    %109 = arith.index_cast %106 : i32 to index
    %c0_60 = arith.constant 0 : index
    %110 = vector.load %arg21[%109, %c0_60] : memref<8x64xf32, #tpu.memory_space<vmem>>, vector<8x64xf32>
    %111 = arith.mulf %108, %110 : vector<8x64xf32>
    %112 = vector.shape_cast %108 : vector<8x64xf32> to vector<8x1x64xf32>
    %113 = vector.shape_cast %97 : vector<8x64xf32> to vector<1x8x64xf32>
    %114 = vector.broadcast %112 : vector<8x1x64xf32> to vector<8x8x64xf32>
    %115 = vector.broadcast %113 : vector<1x8x64xf32> to vector<8x8x64xf32>
    %116 = arith.mulf %114, %115 : vector<8x8x64xf32>
    %117 = math.exp %116 : vector<8x8x64xf32>
    %118 = arith.index_cast %106 : i32 to index
    %c0_61 = arith.constant 0 : index
    %119 = vector.load %arg23[%118, %c0_61] : memref<8x16xf32, #tpu.memory_space<vmem>>, vector<8x16xf32>
    %cst_62 = arith.constant dense<0.000000e+00> : vector<16x8xf32>
    %120 = tpu.matmul %119, %102, %cst_62 {dimension_numbers = #tpu.dot_dimension_numbers<[0], [0], [1], [1], [0, 1, 1, 1], [], []>} : vector<8x16xf32>, vector<8x8xf32>, vector<16x8xf32> -> vector<16x8xf32>
    %121 = vector.extract_strided_slice %120 {offsets = [0, 0], sizes = [8, 8], strides = [1, 1]} : vector<16x8xf32> to vector<8x8xf32>
    %122 = vector.extract_strided_slice %120 {offsets = [8, 0], sizes = [8, 8], strides = [1, 1]} : vector<16x8xf32> to vector<8x8xf32>
    %c0_63 = arith.constant 0 : index
    %c0_64 = arith.constant 0 : index
    %123 = vector.load %arg25[%c0_63, %c0_64] : memref<8x64xf32, #tpu.memory_space<vmem>>, vector<8x64xf32>
    %124 = vector.extract_strided_slice %117 {offsets = [0, 0, 0], sizes = [1, 8, 64], strides = [1, 1, 1]} : vector<8x8x64xf32> to vector<1x8x64xf32>
    %125 = vector.shape_cast %124 : vector<1x8x64xf32> to vector<8x64xf32>
    %126 = arith.mulf %125, %123 : vector<8x64xf32>
    %127 = vector.extract_strided_slice %111 {offsets = [0, 0], sizes = [1, 64], strides = [1, 1]} : vector<8x64xf32> to vector<1x64xf32>
    %128 = vector.extract_strided_slice %121 {offsets = [0, 0], sizes = [8, 1], strides = [1, 1]} : vector<8x8xf32> to vector<8x1xf32>
    %129 = vector.broadcast %127 : vector<1x64xf32> to vector<8x64xf32>
    %130 = vector.broadcast %128 : vector<8x1xf32> to vector<8x64xf32>
    %131 = arith.mulf %129, %130 : vector<8x64xf32>
    %132 = arith.addf %126, %131 : vector<8x64xf32>
    %133 = vector.extract_strided_slice %122 {offsets = [0, 0], sizes = [8, 1], strides = [1, 1]} : vector<8x8xf32> to vector<8x1xf32>
    %134 = vector.broadcast %133 : vector<8x1xf32> to vector<8x64xf32>
    %135 = arith.mulf %134, %132 : vector<8x64xf32>
    %cst_65 = arith.constant dense<0.000000e+00> : vector<64xf32>
    %136 = vector.multi_reduction <add>, %135, %cst_65 [0] : vector<8x64xf32> to vector<64xf32>
    %137 = vector.shape_cast %136 : vector<64xf32> to vector<1x64xf32>
    %138 = vector.extract_strided_slice %117 {offsets = [1, 0, 0], sizes = [1, 8, 64], strides = [1, 1, 1]} : vector<8x8x64xf32> to vector<1x8x64xf32>
    %139 = vector.shape_cast %138 : vector<1x8x64xf32> to vector<8x64xf32>
    %140 = arith.mulf %139, %132 : vector<8x64xf32>
    %141 = vector.extract_strided_slice %111 {offsets = [1, 0], sizes = [1, 64], strides = [1, 1]} : vector<8x64xf32> to vector<1x64xf32>
    %142 = vector.extract_strided_slice %121 {offsets = [0, 1], sizes = [8, 1], strides = [1, 1]} : vector<8x8xf32> to vector<8x1xf32>
    %143 = vector.broadcast %141 : vector<1x64xf32> to vector<8x64xf32>
    %144 = vector.broadcast %142 : vector<8x1xf32> to vector<8x64xf32>
    %145 = arith.mulf %143, %144 : vector<8x64xf32>
    %146 = arith.addf %140, %145 : vector<8x64xf32>
    %147 = vector.extract_strided_slice %122 {offsets = [0, 1], sizes = [8, 1], strides = [1, 1]} : vector<8x8xf32> to vector<8x1xf32>
    %148 = vector.broadcast %147 : vector<8x1xf32> to vector<8x64xf32>
    %149 = arith.mulf %148, %146 : vector<8x64xf32>
    %cst_66 = arith.constant dense<0.000000e+00> : vector<64xf32>
    %150 = vector.multi_reduction <add>, %149, %cst_66 [0] : vector<8x64xf32> to vector<64xf32>
    %151 = vector.shape_cast %150 : vector<64xf32> to vector<1x64xf32>
    %152 = vector.extract_strided_slice %117 {offsets = [2, 0, 0], sizes = [1, 8, 64], strides = [1, 1, 1]} : vector<8x8x64xf32> to vector<1x8x64xf32>
    %153 = vector.shape_cast %152 : vector<1x8x64xf32> to vector<8x64xf32>
    %154 = arith.mulf %153, %146 : vector<8x64xf32>
    %155 = vector.extract_strided_slice %111 {offsets = [2, 0], sizes = [1, 64], strides = [1, 1]} : vector<8x64xf32> to vector<1x64xf32>
    %156 = vector.extract_strided_slice %121 {offsets = [0, 2], sizes = [8, 1], strides = [1, 1]} : vector<8x8xf32> to vector<8x1xf32>
    %157 = vector.broadcast %155 : vector<1x64xf32> to vector<8x64xf32>
    %158 = vector.broadcast %156 : vector<8x1xf32> to vector<8x64xf32>
    %159 = arith.mulf %157, %158 : vector<8x64xf32>
    %160 = arith.addf %154, %159 : vector<8x64xf32>
    %161 = vector.extract_strided_slice %122 {offsets = [0, 2], sizes = [8, 1], strides = [1, 1]} : vector<8x8xf32> to vector<8x1xf32>
    %162 = vector.broadcast %161 : vector<8x1xf32> to vector<8x64xf32>
    %163 = arith.mulf %162, %160 : vector<8x64xf32>
    %cst_67 = arith.constant dense<0.000000e+00> : vector<64xf32>
    %164 = vector.multi_reduction <add>, %163, %cst_67 [0] : vector<8x64xf32> to vector<64xf32>
    %165 = vector.shape_cast %164 : vector<64xf32> to vector<1x64xf32>
    %166 = vector.extract_strided_slice %117 {offsets = [3, 0, 0], sizes = [1, 8, 64], strides = [1, 1, 1]} : vector<8x8x64xf32> to vector<1x8x64xf32>
    %167 = vector.shape_cast %166 : vector<1x8x64xf32> to vector<8x64xf32>
    %168 = arith.mulf %167, %160 : vector<8x64xf32>
    %169 = vector.extract_strided_slice %111 {offsets = [3, 0], sizes = [1, 64], strides = [1, 1]} : vector<8x64xf32> to vector<1x64xf32>
    %170 = vector.extract_strided_slice %121 {offsets = [0, 3], sizes = [8, 1], strides = [1, 1]} : vector<8x8xf32> to vector<8x1xf32>
    %171 = vector.broadcast %169 : vector<1x64xf32> to vector<8x64xf32>
    %172 = vector.broadcast %170 : vector<8x1xf32> to vector<8x64xf32>
    %173 = arith.mulf %171, %172 : vector<8x64xf32>
    %174 = arith.addf %168, %173 : vector<8x64xf32>
    %175 = vector.extract_strided_slice %122 {offsets = [0, 3], sizes = [8, 1], strides = [1, 1]} : vector<8x8xf32> to vector<8x1xf32>
    %176 = vector.broadcast %175 : vector<8x1xf32> to vector<8x64xf32>
    %177 = arith.mulf %176, %174 : vector<8x64xf32>
    %cst_68 = arith.constant dense<0.000000e+00> : vector<64xf32>
    %178 = vector.multi_reduction <add>, %177, %cst_68 [0] : vector<8x64xf32> to vector<64xf32>
    %179 = vector.shape_cast %178 : vector<64xf32> to vector<1x64xf32>
    %180 = vector.extract_strided_slice %117 {offsets = [4, 0, 0], sizes = [1, 8, 64], strides = [1, 1, 1]} : vector<8x8x64xf32> to vector<1x8x64xf32>
    %181 = vector.shape_cast %180 : vector<1x8x64xf32> to vector<8x64xf32>
    %182 = arith.mulf %181, %174 : vector<8x64xf32>
    %183 = vector.extract_strided_slice %111 {offsets = [4, 0], sizes = [1, 64], strides = [1, 1]} : vector<8x64xf32> to vector<1x64xf32>
    %184 = vector.extract_strided_slice %121 {offsets = [0, 4], sizes = [8, 1], strides = [1, 1]} : vector<8x8xf32> to vector<8x1xf32>
    %185 = vector.broadcast %183 : vector<1x64xf32> to vector<8x64xf32>
    %186 = vector.broadcast %184 : vector<8x1xf32> to vector<8x64xf32>
    %187 = arith.mulf %185, %186 : vector<8x64xf32>
    %188 = arith.addf %182, %187 : vector<8x64xf32>
    %189 = vector.extract_strided_slice %122 {offsets = [0, 4], sizes = [8, 1], strides = [1, 1]} : vector<8x8xf32> to vector<8x1xf32>
    %190 = vector.broadcast %189 : vector<8x1xf32> to vector<8x64xf32>
    %191 = arith.mulf %190, %188 : vector<8x64xf32>
    %cst_69 = arith.constant dense<0.000000e+00> : vector<64xf32>
    %192 = vector.multi_reduction <add>, %191, %cst_69 [0] : vector<8x64xf32> to vector<64xf32>
    %193 = vector.shape_cast %192 : vector<64xf32> to vector<1x64xf32>
    %194 = vector.extract_strided_slice %117 {offsets = [5, 0, 0], sizes = [1, 8, 64], strides = [1, 1, 1]} : vector<8x8x64xf32> to vector<1x8x64xf32>
    %195 = vector.shape_cast %194 : vector<1x8x64xf32> to vector<8x64xf32>
    %196 = arith.mulf %195, %188 : vector<8x64xf32>
    %197 = vector.extract_strided_slice %111 {offsets = [5, 0], sizes = [1, 64], strides = [1, 1]} : vector<8x64xf32> to vector<1x64xf32>
    %198 = vector.extract_strided_slice %121 {offsets = [0, 5], sizes = [8, 1], strides = [1, 1]} : vector<8x8xf32> to vector<8x1xf32>
    %199 = vector.broadcast %197 : vector<1x64xf32> to vector<8x64xf32>
    %200 = vector.broadcast %198 : vector<8x1xf32> to vector<8x64xf32>
    %201 = arith.mulf %199, %200 : vector<8x64xf32>
    %202 = arith.addf %196, %201 : vector<8x64xf32>
    %203 = vector.extract_strided_slice %122 {offsets = [0, 5], sizes = [8, 1], strides = [1, 1]} : vector<8x8xf32> to vector<8x1xf32>
    %204 = vector.broadcast %203 : vector<8x1xf32> to vector<8x64xf32>
    %205 = arith.mulf %204, %202 : vector<8x64xf32>
    %cst_70 = arith.constant dense<0.000000e+00> : vector<64xf32>
    %206 = vector.multi_reduction <add>, %205, %cst_70 [0] : vector<8x64xf32> to vector<64xf32>
    %207 = vector.shape_cast %206 : vector<64xf32> to vector<1x64xf32>
    %208 = vector.extract_strided_slice %117 {offsets = [6, 0, 0], sizes = [1, 8, 64], strides = [1, 1, 1]} : vector<8x8x64xf32> to vector<1x8x64xf32>
    %209 = vector.shape_cast %208 : vector<1x8x64xf32> to vector<8x64xf32>
    %210 = arith.mulf %209, %202 : vector<8x64xf32>
    %211 = vector.extract_strided_slice %111 {offsets = [6, 0], sizes = [1, 64], strides = [1, 1]} : vector<8x64xf32> to vector<1x64xf32>
    %212 = vector.extract_strided_slice %121 {offsets = [0, 6], sizes = [8, 1], strides = [1, 1]} : vector<8x8xf32> to vector<8x1xf32>
    %213 = vector.broadcast %211 : vector<1x64xf32> to vector<8x64xf32>
    %214 = vector.broadcast %212 : vector<8x1xf32> to vector<8x64xf32>
    %215 = arith.mulf %213, %214 : vector<8x64xf32>
    %216 = arith.addf %210, %215 : vector<8x64xf32>
    %217 = vector.extract_strided_slice %122 {offsets = [0, 6], sizes = [8, 1], strides = [1, 1]} : vector<8x8xf32> to vector<8x1xf32>
    %218 = vector.broadcast %217 : vector<8x1xf32> to vector<8x64xf32>
    %219 = arith.mulf %218, %216 : vector<8x64xf32>
    %cst_71 = arith.constant dense<0.000000e+00> : vector<64xf32>
    %220 = vector.multi_reduction <add>, %219, %cst_71 [0] : vector<8x64xf32> to vector<64xf32>
    %221 = vector.shape_cast %220 : vector<64xf32> to vector<1x64xf32>
    %222 = vector.extract_strided_slice %117 {offsets = [7, 0, 0], sizes = [1, 8, 64], strides = [1, 1, 1]} : vector<8x8x64xf32> to vector<1x8x64xf32>
    %223 = vector.shape_cast %222 : vector<1x8x64xf32> to vector<8x64xf32>
    %224 = arith.mulf %223, %216 : vector<8x64xf32>
    %225 = vector.extract_strided_slice %111 {offsets = [7, 0], sizes = [1, 64], strides = [1, 1]} : vector<8x64xf32> to vector<1x64xf32>
    %226 = vector.extract_strided_slice %121 {offsets = [0, 7], sizes = [8, 1], strides = [1, 1]} : vector<8x8xf32> to vector<8x1xf32>
    %227 = vector.broadcast %225 : vector<1x64xf32> to vector<8x64xf32>
    %228 = vector.broadcast %226 : vector<8x1xf32> to vector<8x64xf32>
    %229 = arith.mulf %227, %228 : vector<8x64xf32>
    %230 = arith.addf %224, %229 : vector<8x64xf32>
    %231 = vector.extract_strided_slice %122 {offsets = [0, 7], sizes = [8, 1], strides = [1, 1]} : vector<8x8xf32> to vector<8x1xf32>
    %232 = vector.broadcast %231 : vector<8x1xf32> to vector<8x64xf32>
    %233 = arith.mulf %232, %230 : vector<8x64xf32>
    %cst_72 = arith.constant dense<0.000000e+00> : vector<64xf32>
    %234 = vector.multi_reduction <add>, %233, %cst_72 [0] : vector<8x64xf32> to vector<64xf32>
    %235 = vector.shape_cast %234 : vector<64xf32> to vector<1x64xf32>
    %c0_73 = arith.constant 0 : index
    %c0_74 = arith.constant 0 : index
    %236 = vector.load %arg25[%c0_73, %c0_74] : memref<8x64xf32, #tpu.memory_space<vmem>>, vector<8x64xf32>
    tpu.vector_store %arg25[%c0_73, %c0_74], %230 {strides = array<i32>} : memref<8x64xf32, #tpu.memory_space<vmem>>, vector<8x64xf32>,
    %237 = tpu.concatenate %137, %151, %165, %179, %193, %207, %221, %235 in 0 : vector<1x64xf32>, vector<1x64xf32>, vector<1x64xf32>, vector<1x64xf32>, vector<1x64xf32>, vector<1x64xf32>, vector<1x64xf32>, vector<1x64xf32> -> vector<8x64xf32>
    %238 = arith.index_cast %106 : i32 to index
    %c0_75 = arith.constant 0 : index
    %239 = vector.load %arg24[%238, %c0_75] : memref<8x64xf32, #tpu.memory_space<vmem>>, vector<8x64xf32>
    tpu.vector_store %arg24[%238, %c0_75], %237 {strides = array<i32>} : memref<8x64xf32, #tpu.memory_space<vmem>>, vector<8x64xf32>,
    %c1_i32_76 = arith.constant 1 : i32
    %c0_77 = arith.constant 0 : index
    %c0_78 = arith.constant 0 : index
    %240 = vector.load %arg8[%c0_77, %c0_78] : memref<32x64xbf16, #tpu.memory_space<vmem>>, vector<32x64xbf16>
    %cst_79 = arith.constant dense<0.000000e+00> : vector<8x64xf32>
    %241 = tpu.matmul %33, %240, %cst_79 {dimension_numbers = #tpu.dot_dimension_numbers<[1], [0], [0], [1], [0, 0, 1, 1], [], []>} : vector<8x32xbf16>, vector<32x64xbf16>, vector<8x64xf32> -> vector<8x64xf32>
    %c0_80 = arith.constant 0 : index
    %c0_81 = arith.constant 0 : index
    %242 = vector.load %arg24[%c0_80, %c0_81] : memref<8x64xf32, #tpu.memory_space<vmem>>, vector<8x64xf32>
    %c0_82 = arith.constant 0 : index
    %c0_83 = arith.constant 0 : index
    %243 = vector.load %arg21[%c0_82, %c0_83] : memref<8x64xf32, #tpu.memory_space<vmem>>, vector<8x64xf32>
    %c0_84 = arith.constant 0 : index
    %c0_85 = arith.constant 0 : index
    %244 = vector.load %arg16[%c0_84, %c0_85] : memref<1x64xf32, #tpu.memory_space<vmem>>, vector<1x64xf32>
    %245 = vector.broadcast %244 : vector<1x64xf32> to vector<8x64xf32>
    %246 = arith.mulf %243, %245 : vector<8x64xf32>
    %247 = arith.addf %242, %246 : vector<8x64xf32>
    %248 = arith.negf %241 : vector<8x64xf32>
    %249 = math.exp %248 : vector<8x64xf32>
    %cst_86 = arith.constant 1.000000e+00 : f32
    %250 = vector.broadcast %cst_86 : f32 to vector<8x64xf32>
    %251 = arith.addf %250, %249 : vector<8x64xf32>
    %252 = arith.divf %250, %251 : vector<8x64xf32>
    %253 = arith.mulf %241, %252 : vector<8x64xf32>
    %254 = arith.mulf %247, %253 : vector<8x64xf32>
    %255 = arith.truncf %254 : vector<8x64xf32> to vector<8x64xbf16>
    %c0_87 = arith.constant 0 : index
    %c0_88 = arith.constant 0 : index
    %256 = vector.load %arg17[%c0_87, %c0_88] : memref<64x32xbf16, #tpu.memory_space<vmem>>, vector<64x32xbf16>
    %cst_89 = arith.constant dense<0.000000e+00> : vector<8x32xf32>
    %257 = tpu.matmul %255, %256, %cst_89 {dimension_numbers = #tpu.dot_dimension_numbers<[1], [0], [0], [1], [0, 0, 1, 1], [], []>} : vector<8x64xbf16>, vector<64x32xbf16>, vector<8x32xf32> -> vector<8x32xf32>
    %c0_90 = arith.constant 0 : index
    %c0_91 = arith.constant 0 : index
    %c0_92 = arith.constant 0 : index
    %258 = vector.load %arg18[%c0_90, %c0_91, %c0_92] : memref<1x8x32xf32, #tpu.memory_space<vmem>>, vector<1x8x32xf32>
    %259 = vector.shape_cast %258 : vector<1x8x32xf32> to vector<8x32xf32>
    %260 = vector.shape_cast %257 : vector<8x32xf32> to vector<1x8x32xf32>
    tpu.vector_store %arg18[%c0_90, %c0_91, %c0_92], %260 {strides = array<i32>} : memref<1x8x32xf32, #tpu.memory_space<vmem>>, vector<1x8x32xf32>,
    return
  }
  func.func @transform_0(%arg0: i32, %arg1: i32) -> (i32, i32, i32) {
    %c0_i32 = arith.constant 0 : i32
    %c0_i32_0 = arith.constant 0 : i32
    return %arg0, %arg1, %c0_i32 : i32, i32, i32
  }
  func.func @transform_1(%arg0: i32, %arg1: i32) -> (i32, i32, i32) {
    %c0_i32 = arith.constant 0 : i32
    %c0_i32_0 = arith.constant 0 : i32
    return %arg0, %arg1, %c0_i32 : i32, i32, i32
  }
  func.func @transform_2(%arg0: i32, %arg1: i32) -> (i32, i32, i32) {
    %c0_i32 = arith.constant 0 : i32
    %c0_i32_0 = arith.constant 0 : i32
    return %arg0, %arg1, %c0_i32 : i32, i32, i32
  }
  func.func @transform_3(%arg0: i32, %arg1: i32) -> (i32, i32) {
    %c0_i32 = arith.constant 0 : i32
    %c0_i32_0 = arith.constant 0 : i32
    %c0_i32_1 = arith.constant 0 : i32
    return %c0_i32, %c0_i32_0 : i32, i32
  }
  func.func @transform_4(%arg0: i32, %arg1: i32) -> (i32, i32) {
    %c0_i32 = arith.constant 0 : i32
    %c0_i32_0 = arith.constant 0 : i32
    %c0_i32_1 = arith.constant 0 : i32
    return %c0_i32, %c0_i32_0 : i32, i32
  }
  func.func @transform_5(%arg0: i32, %arg1: i32) -> (i32, i32) {
    %c0_i32 = arith.constant 0 : i32
    %c0_i32_0 = arith.constant 0 : i32
    %c0_i32_1 = arith.constant 0 : i32
    return %c0_i32, %c0_i32_0 : i32, i32
  }
  func.func @transform_6(%arg0: i32, %arg1: i32) -> (i32, i32) {
    %c0_i32 = arith.constant 0 : i32
    %c0_i32_0 = arith.constant 0 : i32
    %c0_i32_1 = arith.constant 0 : i32
    return %c0_i32, %c0_i32_0 : i32, i32
  }
  func.func @transform_7(%arg0: i32, %arg1: i32) -> (i32, i32) {
    %c0_i32 = arith.constant 0 : i32
    %c0_i32_0 = arith.constant 0 : i32
    %c0_i32_1 = arith.constant 0 : i32
    return %c0_i32, %c0_i32_0 : i32, i32
  }
  func.func @transform_8(%arg0: i32, %arg1: i32) -> (i32, i32) {
    %c0_i32 = arith.constant 0 : i32
    %c0_i32_0 = arith.constant 0 : i32
    %c0_i32_1 = arith.constant 0 : i32
    return %c0_i32, %c0_i32_0 : i32, i32
  }
  func.func @transform_9(%arg0: i32, %arg1: i32) -> (i32, i32) {
    %c0_i32 = arith.constant 0 : i32
    %c0_i32_0 = arith.constant 0 : i32
    %c0_i32_1 = arith.constant 0 : i32
    return %c0_i32, %c0_i32_0 : i32, i32
  }
  func.func @transform_10(%arg0: i32, %arg1: i32) -> (i32, i32) {
    %c0_i32 = arith.constant 0 : i32
    %c0_i32_0 = arith.constant 0 : i32
    %c0_i32_1 = arith.constant 0 : i32
    return %c0_i32, %c0_i32_0 : i32, i32
  }
  func.func @transform_11(%arg0: i32, %arg1: i32) -> (i32, i32) {
    %c0_i32 = arith.constant 0 : i32
    %c0_i32_0 = arith.constant 0 : i32
    %c0_i32_1 = arith.constant 0 : i32
    return %c0_i32, %c0_i32_0 : i32, i32
  }
  func.func @transform_12(%arg0: i32, %arg1: i32) -> (i32, i32) {
    %c0_i32 = arith.constant 0 : i32
    %c0_i32_0 = arith.constant 0 : i32
    %c0_i32_1 = arith.constant 0 : i32
    return %c0_i32, %c0_i32_0 : i32, i32
  }
  func.func @transform_13(%arg0: i32, %arg1: i32) -> (i32, i32) {
    %c0_i32 = arith.constant 0 : i32
    %c0_i32_0 = arith.constant 0 : i32
    %c0_i32_1 = arith.constant 0 : i32
    return %c0_i32, %c0_i32_0 : i32, i32
  }
  func.func @transform_14(%arg0: i32, %arg1: i32) -> (i32, i32) {
    %c0_i32 = arith.constant 0 : i32
    %c0_i32_0 = arith.constant 0 : i32
    %c0_i32_1 = arith.constant 0 : i32
    return %c0_i32, %c0_i32_0 : i32, i32
  }
  func.func @transform_15(%arg0: i32, %arg1: i32) -> (i32, i32) {
    %c0_i32 = arith.constant 0 : i32
    %c0_i32_0 = arith.constant 0 : i32
    %c0_i32_1 = arith.constant 0 : i32
    return %c0_i32, %c0_i32_0 : i32, i32
  }
  func.func @transform_16(%arg0: i32, %arg1: i32) -> (i32, i32, i32) {
    %c0_i32 = arith.constant 0 : i32
    %c0_i32_0 = arith.constant 0 : i32
    return %arg0, %arg1, %c0_i32 : i32, i32, i32
  }
  func.func @transform_17(%arg0: i32, %arg1: i32) -> (i32, i32, i32) {
    %c0_i32 = arith.constant 0 : i32
    %c0_i32_0 = arith.constant 0 : i32
    return %arg0, %arg1, %c0_i32 : i32, i32, i32
  }
}

</mosaic_0001>

<llo_original>
// kernel: mixer_ts_decoder_forward.5
$region0: #{mixer_ts_decoder_forward.5}
  #allocation0 [shape = 'u32[]', space=smem, size = 0x4, offset = 0x4, fixed_abs, tag = 'smem constant byte address 0x4 - core index']
  #allocation1 [shape = 'u32[144,128]{1,0:T(1,128)}', space=vmem, size = 0x12000, scoped, tag = 'internal scratch']
  %s0 = inlined_call_operand.vmem [shape: f32[2,8,32], index: 0, kind: input, shape index: {}]
  %s1 = inlined_call_operand.vmem [shape: f32[2,8,32], index: 1, kind: input, shape index: {}]
  %s2 = inlined_call_operand.vmem [shape: f32[1,32], index: 2, kind: input, shape index: {}]
  %s3 = inlined_call_operand.vmem [shape: f32[1,32], index: 3, kind: input, shape index: {}]
  %s4 = inlined_call_operand.hbm [shape: f32[2,8,32], index: 4, kind: output, shape index: {}]
  %s5 = sld [smem:[#allocation0]]
  $region49: #{mixer_ts_decoder_forward.5} parent=0
    _
  %s7 = ssub.s32 1, %s5
  %s8 = scalar_select 0, %s7, %s5
  $region1: #{mixer_ts_decoder_forward.5} parent=0
    #allocation2 [shape = 'u8[8192]{0}', space=vmem, size = 0x2000, scoped, tag = 'output window, operand 0']
    #allocation3 [shape = 's32[2]{0}', space=sflag, size = 0x8, scoped, tag = 'scoped memory for mixer_ts_decoder_forward.5']
    %9 = vsyncpa [#allocation3], 0
    %s10 = scalar_lea.sflag [#allocation3], 1
    %11 = vsyncpa %s10, 0
    loop: start=0, step=1, limit=4
    $region2: #{mixer_ts_decoder_forward.5} parent=1 // loop_pre_header
      _
    $region3: #{mixer_ts_decoder_forward.5} parent=1 // loop_header
      %s13 = sphi 0, %s17
      %p14 = scmp.ge.s32.totalorder %s13, 4
      %s20 = sphi 0, %s32
      %s21 = sphi 0, %s28
      %s22 = sphi 0, %s20
      %s23 = sphi 0, %s21
      %s24 = sphi 0, %s22
      %s25 = sphi 0, %s23
      %s37 = sphi 0, %s39
      %s40 = sphi 0, %s37
      %s41 = sphi 0, %s40
      %s57 = sphi 0, %s41
      %s65 = sphi 0, %s67
      %s68 = sphi 0, %s65
      %s69 = sphi 0, %s68
      %s85 = sphi 0, %s69
      %s89 = sphi 0, %s89
      %s91 = sphi 0, %s89
      %s92 = sphi 0, %s91
      %s106 = sphi 0, %s92
      %s110 = sphi 0, %s110
      %s112 = sphi 0, %s110
      %s113 = sphi 0, %s112
      %s127 = sphi 0, %s113
      %s135 = sphi 0, %s137
      %s138 = sphi 0, %s135
      %s139 = sphi 0, %s138
      %s155 = sphi 0, %s139
    $region4: #{mixer_ts_decoder_forward.5} parent=1 // loop_header_branch
      %16 = sbr.rel (%p14) target = $region8
    $region5: #{mixer_ts_decoder_forward.5} parent=1 // loop_body
      %s18 = ssub.s32 %s13, 1
      %s19 = ssub.s32 %s13, 2
      %s26 = sadd.s32 1, %s21
      %p27 = scmp.ge.s32.totalorder %s26, 1
      %s28 = scalar_select %p27, 0, %s26
      %s29 = sadd.s32 1, %s20
      %s30 = scalar_select %p27, %s29, %s20
      %p31 = scmp.ge.s32.totalorder %s30, 2
      %s32 = scalar_select %p31, 0, %s30
      %s33 = ssub.s32 %s20, %s32
      %s34 = ssub.s32 %s21, %s28
      %s35 = sor.u32 %s33, %s34
      %p36 = scmp.eq.s32.totalorder %s35, 0
      %s38 = sadd.s32 %s37, 1
      %s39 = scalar_select %p36, %s37, %s38
      %p42 = pneg %p36
      %p43 = scmp.eq.s32.totalorder %s13, 1
      %p44 = por %p42, %p43
      %p45 = scmp.ne.s32.totalorder %s37, %s40
      %p46 = scmp.eq.s32.totalorder %s13, 0
      %p47 = por %p45, %p46
      %p48 = scmp.ne.s32.totalorder %s37, %s40
      %p49 = scmp.eq.s32.totalorder %s18, 1
      %p50 = por %p48, %p49
      %p51 = scmp.ne.s32.totalorder %s40, %s41
      %p52 = scmp.eq.s32.totalorder %s18, 0
      %p53 = por %p51, %p52
      %p54 = scmp.ne.s32.totalorder %s40, %s41
      %p55 = scmp.eq.s32.totalorder %s19, 1
      %p56 = por %p54, %p55
      %p58 = scmp.ne.s32.totalorder %s41, %s57
      %p59 = scmp.eq.s32.totalorder %s19, 0
      %p60 = por %p58, %p59
      %s61 = ssub.s32 %s20, %s32
      %s62 = ssub.s32 %s21, %s28
      %s63 = sor.u32 %s61, %s62
      %p64 = scmp.eq.s32.totalorder %s63, 0
      %s66 = sadd.s32 %s65, 1
      %s67 = scalar_select %p64, %s65, %s66
      %p70 = pneg %p64
      %p71 = scmp.eq.s32.totalorder %s13, 1
      %p72 = por %p70, %p71
      %p73 = scmp.ne.s32.totalorder %s65, %s68
      %p74 = scmp.eq.s32.totalorder %s13, 0
      %p75 = por %p73, %p74
      %p76 = scmp.ne.s32.totalorder %s65, %s68
      %p77 = scmp.eq.s32.totalorder %s18, 1
      %p78 = por %p76, %p77
      %p79 = scmp.ne.s32.totalorder %s68, %s69
      %p80 = scmp.eq.s32.totalorder %s18, 0
      %p81 = por %p79, %p80
      %p82 = scmp.ne.s32.totalorder %s68, %s69
      %p83 = scmp.eq.s32.totalorder %s19, 1
      %p84 = por %p82, %p83
      %p86 = scmp.ne.s32.totalorder %s69, %s85
      %p87 = scmp.eq.s32.totalorder %s19, 0
      %p88 = por %p86, %p87
      %s90 = sadd.s32 %s89, 1
      %p93 = scmp.eq.s32.totalorder %s13, 1
      %p94 = scmp.ne.s32.totalorder %s89, %s91
      %p95 = scmp.eq.s32.totalorder %s13, 0
      %p96 = por %p94, %p95
      %p97 = scmp.ne.s32.totalorder %s89, %s91
      %p98 = scmp.eq.s32.totalorder %s18, 1
      %p99 = por %p97, %p98
      %p100 = scmp.ne.s32.totalorder %s91, %s92
      %p101 = scmp.eq.s32.totalorder %s18, 0
      %p102 = por %p100, %p101
      %p103 = scmp.ne.s32.totalorder %s91, %s92
      %p104 = scmp.eq.s32.totalorder %s19, 1
      %p105 = por %p103, %p104
      %p107 = scmp.ne.s32.totalorder %s92, %s106
      %p108 = scmp.eq.s32.totalorder %s19, 0
      %p109 = por %p107, %p108
      %s111 = sadd.s32 %s110, 1
      %p114 = scmp.eq.s32.totalorder %s13, 1
      %p115 = scmp.ne.s32.totalorder %s110, %s112
      %p116 = scmp.eq.s32.totalorder %s13, 0
      %p117 = por %p115, %p116
      %p118 = scmp.ne.s32.totalorder %s110, %s112
      %p119 = scmp.eq.s32.totalorder %s18, 1
      %p120 = por %p118, %p119
      %p121 = scmp.ne.s32.totalorder %s112, %s113
      %p122 = scmp.eq.s32.totalorder %s18, 0
      %p123 = por %p121, %p122
      %p124 = scmp.ne.s32.totalorder %s112, %s113
      %p125 = scmp.eq.s32.totalorder %s19, 1
      %p126 = por %p124, %p125
      %p128 = scmp.ne.s32.totalorder %s113, %s127
      %p129 = scmp.eq.s32.totalorder %s19, 0
      %p130 = por %p128, %p129
      %s131 = ssub.s32 %s20, %s32
      %s132 = ssub.s32 %s21, %s28
      %s133 = sor.u32 %s131, %s132
      %p134 = scmp.eq.s32.totalorder %s133, 0
      %s136 = sadd.s32 %s135, 1
      %s137 = scalar_select %p134, %s135, %s136
      %p140 = pneg %p134
      %p141 = scmp.eq.s32.totalorder %s13, 1
      %p142 = por %p140, %p141
      %p143 = scmp.ne.s32.totalorder %s135, %s138
      %p144 = scmp.eq.s32.totalorder %s13, 0
      %p145 = por %p143, %p144
      %p146 = scmp.ne.s32.totalorder %s135, %s138
      %p147 = scmp.eq.s32.totalorder %s18, 1
      %p148 = por %p146, %p147
      %p149 = scmp.ne.s32.totalorder %s138, %s139
      %p150 = scmp.eq.s32.totalorder %s18, 0
      %p151 = por %p149, %p150
      %p152 = scmp.ne.s32.totalorder %s138, %s139
      %p153 = scmp.eq.s32.totalorder %s19, 1
      %p154 = por %p152, %p153
      %p156 = scmp.ne.s32.totalorder %s139, %s155
      %p157 = scmp.eq.s32.totalorder %s19, 0
      %p158 = por %p156, %p157
      %p159 = scmp.le.s32.totalorder 1, %s13
      %p160 = scmp.lt.s32.totalorder %s13, 3
      %p161 = pnand %p159, %p160
      %p162 = pneg %p161
      // Predicated region
      $region9: #{mixer_ts_decoder_forward.5} parent=5 // pred_check
        _
      $region10: #{mixer_ts_decoder_forward.5} parent=5 // pred_check_branch
        %164 = sbr.rel (%p161) target = $region12
      $region11: #{mixer_ts_decoder_forward.5} parent=5 // pred_region
        %s165 = ssub.s32 %s13, 1
        // Predicated region
        $region13: #{mixer_ts_decoder_forward.5} parent=11 // pred_check
          %p166 = pneg %p102
        $region14: #{mixer_ts_decoder_forward.5} parent=11 // pred_check_branch
          %168 = sbr.rel (%p166) target = $region16
        $region15: #{mixer_ts_decoder_forward.5} parent=11 // pred_region
          _
        $region16: #{mixer_ts_decoder_forward.5} parent=11 // pred_fallthru
          _
        // Predicated region
        $region17: #{mixer_ts_decoder_forward.5} parent=11 // pred_check
          %p169 = pneg %p123
        $region18: #{mixer_ts_decoder_forward.5} parent=11 // pred_check_branch
          %171 = sbr.rel (%p169) target = $region20
        $region19: #{mixer_ts_decoder_forward.5} parent=11 // pred_region
          _
        $region20: #{mixer_ts_decoder_forward.5} parent=11 // pred_fallthru
          _
      $region12: #{mixer_ts_decoder_forward.5} parent=5 // pred_fallthru
        _
      %p172 = scmp.lt.s32.totalorder %s13, 2
      // Predicated region
      $region21: #{mixer_ts_decoder_forward.5} parent=5 // pred_check
        %p173 = pneg %p172
      $region22: #{mixer_ts_decoder_forward.5} parent=5 // pred_check_branch
        %175 = sbr.rel (%p173) target = $region24
      $region23: #{mixer_ts_decoder_forward.5} parent=5 // pred_region
        // Predicated region
        $region25: #{mixer_ts_decoder_forward.5} parent=23 // pred_check
          %p176 = pneg %p47
        $region26: #{mixer_ts_decoder_forward.5} parent=23 // pred_check_branch
          %178 = sbr.rel (%p176) target = $region28
        $region27: #{mixer_ts_decoder_forward.5} parent=23 // pred_region
          %p179 = scmp.lt.s32.totalorder %s20, 1
          %s180 = scalar_select %p179, %s20, 1
          %p181 = scmp.lt.s32.totalorder %s21, 0
          %s182 = scalar_select %p181, %s21, 0
          %s183 = sadd.s32 %s182, %s180
          %s184 = smul.addr %s183, 8
          %s185 = scalar_lea.vmem %s0, %s184
        $region28: #{mixer_ts_decoder_forward.5} parent=23 // pred_fallthru
          _
        // Predicated region
        $region29: #{mixer_ts_decoder_forward.5} parent=23 // pred_check
          %p186 = pneg %p75
        $region30: #{mixer_ts_decoder_forward.5} parent=23 // pred_check_branch
          %188 = sbr.rel (%p186) target = $region32
        $region31: #{mixer_ts_decoder_forward.5} parent=23 // pred_region
          %p189 = scmp.lt.s32.totalorder %s20, 1
          %s190 = scalar_select %p189, %s20, 1
          %p191 = scmp.lt.s32.totalorder %s21, 0
          %s192 = scalar_select %p191, %s21, 0
          %s193 = sadd.s32 %s192, %s190
          %s194 = smul.addr %s193, 8
          %s195 = scalar_lea.vmem %s1, %s194
        $region32: #{mixer_ts_decoder_forward.5} parent=23 // pred_fallthru
          _
      $region24: #{mixer_ts_decoder_forward.5} parent=5 // pred_fallthru
        _
      %p196 = scmp.le.s32.totalorder 1, %s13
      %p197 = scmp.lt.s32.totalorder %s13, 3
      %p198 = pnand %p196, %p197
      %p199 = pneg %p198
      // Predicated region
      $region33: #{mixer_ts_decoder_forward.5} parent=5 // pred_check
        _
      $region34: #{mixer_ts_decoder_forward.5} parent=5 // pred_check_branch
        %201 = sbr.rel (%p198) target = $region36
      $region35: #{mixer_ts_decoder_forward.5} parent=5 // pred_region
        %s202 = ssub.s32 %s13, 1
        %p203 = scmp.lt.s32.totalorder %s22, 1
        %s204 = scalar_select %p203, %s22, 1
        %p205 = scmp.lt.s32.totalorder %s23, 0
        %s206 = scalar_select %p205, %s23, 0
        %s207 = sadd.s32 %s206, %s204
        %s208 = smul.addr %s207, 8
        %s209 = scalar_lea.vmem %s0, %s208
        %p210 = pneg %p53
        %p211 = pneg %p50
        %p212 = scmp.lt.s32.totalorder %s22, 1
        %s213 = scalar_select %p212, %s22, 1
        %p214 = scmp.lt.s32.totalorder %s23, 0
        %s215 = scalar_select %p214, %s23, 0
        %s216 = sadd.s32 %s215, %s213
        %s217 = smul.addr %s216, 8
        %s218 = scalar_lea.vmem %s1, %s217
        %p219 = pneg %p81
        %p220 = pneg %p78
        %p221 = pneg %p102
        %p222 = pneg %p99
        %p223 = pneg %p123
        %p224 = pneg %p120
        %p225 = pneg %p151
        %p226 = pneg %p148
        %s227 = sand.u32 %s138, 1
        %s228 = scalar_lea.sflag [#allocation3], %s227
        %s229 = sand.u32 %s138, 1
        %s230 = smul.addr %s229, 8
        %s231 = scalar_lea.vmem [#allocation2], %s230
        %p232 = scmp.lt.s32.totalorder %s22, 1
        %s233 = scalar_select %p232, %s22, 1
        %p234 = scmp.lt.s32.totalorder %s23, 0
        %s235 = scalar_select %p234, %s23, 0
        %s236 = sadd.s32 %s235, %s233
        %s237 = smul.addr %s236, 8
        %s238 = scalar_lea.vmem %s0, %s237
        %p239 = scmp.lt.s32.totalorder %s22, 1
        %s240 = scalar_select %p239, %s22, 1
        %p241 = scmp.lt.s32.totalorder %s23, 0
        %s242 = scalar_select %p241, %s23, 0
        %s243 = sadd.s32 %s242, %s240
        %s244 = smul.addr %s243, 8
        %s245 = scalar_lea.vmem %s1, %s244
        %v246 = vld [vmem:[%s238] sm:$0xff]
        %v247 = vld [vmem:[%s245] sm:$0xff]
        %v248 = vadd.f32 %v246, %v247
        %v249 = vld [vmem:[%s2] sm:$0x1]
        %v250 = vld [vmem:[%s3] sm:$0x1]
        %vm251 = vcmask 261120
        %v252 = vsel %vm251, %v248, 0.0
        %253 = vadd.xlane.f32.xlu0 %v252
        %v254 = vpop.xlane.xlu0 %253
        %v255 = vrcp.pop 32.0
        %v256 = vmul.f32 %v254, %v255
        %v257 = vsub.f32 %v248, %v256
        %v258 = vmul.f32 %v257, %v257
        %v259 = vsel %vm251, %v258, 0.0
        %260 = vadd.xlane.f32.xlu0 %v259
        %v261 = vpop.xlane.xlu0 %260
        %v262 = vmul.f32 %v261, %v255
        %v263 = vadd.f32 %v262, 1e-05
        %v264 = vrsqrt.pop %v263
        %v265 = vmul.f32 %v257, %v264
        %v267 = vlaneseq
        %v268 = vshrl.u32 %v267, 7
        %v269 = vsub.s32 0, %v268
        %v270 = vrot.slane %v249, %v269
        %v272 = vmul.f32 %v265, %v270
        %v274 = vlaneseq
        %v275 = vshrl.u32 %v274, 7
        %v276 = vsub.s32 0, %v275
        %v277 = vrot.slane %v250, %v276
        %v279 = vadd.f32 %v272, %v277
        %280 = vst.msk [vmem:[%s231] sm:$0xff] %vm251, %v279
        %s281 = sand.u32 %s138, 1
        %s282 = scalar_lea.sflag [#allocation3], %s281
        %s283 = sand.u32 %s138, 1
        %s284 = smul.addr %s283, 8
        %s285 = scalar_lea.vmem [#allocation2], %s284
        // Predicated region
        $region37: #{mixer_ts_decoder_forward.5} parent=35 // pred_check
          %p286 = pneg %p148
        $region38: #{mixer_ts_decoder_forward.5} parent=35 // pred_check_branch
          %288 = sbr.rel (%p286) target = $region40
        $region39: #{mixer_ts_decoder_forward.5} parent=35 // pred_region
          %s290 = ssub.s32 128, 128
          %291 = vsyncadd %s282, %s290
          %s292 = sadd.s32 %s23, %s22
          %s293 = smul.addr %s292, 128
          %s294 = scalar_lea.hbm %s4, %s293
          %s296 = sshll.u32 %s285, 4
          %s297 = int_to_ptr.vmem [resolvable:$true] %s296
          %299 = dma.vmem_to_hbm [thread:$0]  %s297, 128, %s294, %s282
        $region40: #{mixer_ts_decoder_forward.5} parent=35 // pred_fallthru
          _
      $region36: #{mixer_ts_decoder_forward.5} parent=5 // pred_fallthru
        _
      %p300 = scmp.le.s32.totalorder 2, %s13
      // Predicated region
      $region41: #{mixer_ts_decoder_forward.5} parent=5 // pred_check
        %p301 = pneg %p300
      $region42: #{mixer_ts_decoder_forward.5} parent=5 // pred_check_branch
        %303 = sbr.rel (%p301) target = $region44
      $region43: #{mixer_ts_decoder_forward.5} parent=5 // pred_region
        %s304 = ssub.s32 %s13, 2
        // Predicated region
        $region45: #{mixer_ts_decoder_forward.5} parent=43 // pred_check
          %p305 = pneg %p154
        $region46: #{mixer_ts_decoder_forward.5} parent=43 // pred_check_branch
          %307 = sbr.rel (%p305) target = $region48
        $region47: #{mixer_ts_decoder_forward.5} parent=43 // pred_region
          %s308 = sand.u32 %s139, 1
          %s309 = scalar_lea.sflag [#allocation3], %s308
          %s310 = sand.u32 %s139, 1
          %s311 = smul.addr %s310, 8
          %s312 = scalar_lea.vmem [#allocation2], %s311
          %313 = dma.done %s309, 128
        $region48: #{mixer_ts_decoder_forward.5} parent=43 // pred_fallthru
          _
      $region44: #{mixer_ts_decoder_forward.5} parent=5 // pred_fallthru
        _
    $region6: #{mixer_ts_decoder_forward.5} parent=1 // loop_footer
      %s17 = sadd.s32 1, %s13
    $region7: #{mixer_ts_decoder_forward.5} parent=1 // loop_footer_branch
      %12 = sbr.rel target = $region3
    $region8: #{mixer_ts_decoder_forward.5} parent=1 // loop_exit
      _
    %314 = vsyncpa [#allocation3], 1
    %s315 = scalar_lea.sflag [#allocation3], 1
    %316 = vsyncpa %s315, 1

// kernel: mixer_ts_decoder_forward.3
$region0: #{mixer_ts_decoder_forward.3}
  #allocation0 [shape = 'u32[]', space=smem, size = 0x4, offset = 0x4, fixed_abs, tag = 'smem constant byte address 0x4 - core index']
  #allocation1 [shape = 'u32[144,128]{1,0:T(1,128)}', space=vmem, size = 0x12000, scoped, tag = 'internal scratch']
  #allocation2 [shape = 'f32[16,64]{1,0:T(8,128)}', space=vmem, size = 0x2000, scoped, tag = 'scratch operand']
  #allocation3 [shape = 'f32[8,64]{1,0:T(8,128)}', space=vmem, size = 0x1000, scoped, tag = 'scratch operand']
  #allocation4 [shape = 'f32[8,64]{1,0:T(8,128)}', space=vmem, size = 0x1000, scoped, tag = 'scratch operand']
  #allocation5 [shape = 'f32[8,16]{1,0:T(8,128)}', space=vmem, size = 0x1000, scoped, tag = 'scratch operand']
  #allocation6 [shape = 'f32[8,64]{1,0:T(8,128)}', space=vmem, size = 0x1000, scoped, tag = 'scratch operand']
  #allocation7 [shape = 'f32[8,64]{1,0:T(8,128)}', space=vmem, size = 0x1000, scoped, tag = 'scratch operand']
  %s0 = inlined_call_operand.vmem [shape: f32[2,8,32], index: 0, kind: input, shape index: {}]
  %s1 = inlined_call_operand.vmem [shape: f32[2,8,32], index: 1, kind: input, shape index: {}]
  %s2 = inlined_call_operand.vmem [shape: f32[2,8,32], index: 2, kind: input, shape index: {}]
  %s3 = inlined_call_operand.vmem [shape: f32[1,32], index: 3, kind: input, shape index: {}]
  %s4 = inlined_call_operand.vmem [shape: f32[1,32], index: 4, kind: input, shape index: {}]
  %s5 = inlined_call_operand.vmem [shape: bf16[32,64], index: 5, kind: input, shape index: {}]
  %s6 = inlined_call_operand.vmem [shape: bf16[32,64], index: 6, kind: input, shape index: {}]
  %s7 = inlined_call_operand.vmem [shape: f32[4,64], index: 7, kind: input, shape index: {}]
  %s8 = inlined_call_operand.vmem [shape: f32[1,64], index: 8, kind: input, shape index: {}]
  %s9 = inlined_call_operand.vmem [shape: bf16[32,2], index: 9, kind: input, shape index: {}]
  %s10 = inlined_call_operand.vmem [shape: bf16[32,16], index: 10, kind: input, shape index: {}]
  %s11 = inlined_call_operand.vmem [shape: bf16[2,64], index: 11, kind: input, shape index: {}]
  %s12 = inlined_call_operand.vmem [shape: f32[1,64], index: 12, kind: input, shape index: {}]
  %s13 = inlined_call_operand.vmem [shape: f32[8,64], index: 13, kind: input, shape index: {}]
  %s14 = inlined_call_operand.vmem [shape: f32[1,64], index: 14, kind: input, shape index: {}]
  %s15 = inlined_call_operand.vmem [shape: bf16[64,32], index: 15, kind: input, shape index: {}]
  %s16 = inlined_call_operand.vmem [shape: f32[2,8,32], index: 16, kind: output, shape index: {0}]
  %s17 = inlined_call_operand.vmem [shape: f32[2,8,32], index: 17, kind: output, shape index: {1}]
  %18 = xla_tuple %s16, %s17
  %s19 = sld [smem:[#allocation0]]
  $region109: #{mixer_ts_decoder_forward.3} parent=0
    _
  %s21 = ssub.s32 1, %s19
  %s22 = scalar_select 0, %s21, %s19
  loop: start=0, step=1, limit=4
  $region2: #{mixer_ts_decoder_forward.3} parent=0 // loop_pre_header
    _
  $region3: #{mixer_ts_decoder_forward.3} parent=0 // loop_header
    %s24 = sphi 0, %s28
    %p25 = scmp.ge.s32.totalorder %s24, 4
    %s31 = sphi 0, %s43
    %s32 = sphi 0, %s39
    %s33 = sphi 0, %s31
    %s34 = sphi 0, %s32
    %s35 = sphi 0, %s33
    %s36 = sphi 0, %s34
    %s48 = sphi 0, %s50
    %s51 = sphi 0, %s48
    %s52 = sphi 0, %s51
    %s68 = sphi 0, %s52
    %s76 = sphi 0, %s78
    %s79 = sphi 0, %s76
    %s80 = sphi 0, %s79
    %s96 = sphi 0, %s80
    %s104 = sphi 0, %s106
    %s107 = sphi 0, %s104
    %s108 = sphi 0, %s107
    %s124 = sphi 0, %s108
    %s128 = sphi 0, %s128
    %s130 = sphi 0, %s128
    %s131 = sphi 0, %s130
    %s145 = sphi 0, %s131
    %s149 = sphi 0, %s149
    %s151 = sphi 0, %s149
    %s152 = sphi 0, %s151
    %s166 = sphi 0, %s152
    %s170 = sphi 0, %s170
    %s172 = sphi 0, %s170
    %s173 = sphi 0, %s172
    %s187 = sphi 0, %s173
    %s191 = sphi 0, %s191
    %s193 = sphi 0, %s191
    %s194 = sphi 0, %s193
    %s208 = sphi 0, %s194
    %s212 = sphi 0, %s212
    %s214 = sphi 0, %s212
    %s215 = sphi 0, %s214
    %s229 = sphi 0, %s215
    %s233 = sphi 0, %s233
    %s235 = sphi 0, %s233
    %s236 = sphi 0, %s235
    %s250 = sphi 0, %s236
    %s254 = sphi 0, %s254
    %s256 = sphi 0, %s254
    %s257 = sphi 0, %s256
    %s271 = sphi 0, %s257
    %s275 = sphi 0, %s275
    %s277 = sphi 0, %s275
    %s278 = sphi 0, %s277
    %s292 = sphi 0, %s278
    %s296 = sphi 0, %s296
    %s298 = sphi 0, %s296
    %s299 = sphi 0, %s298
    %s313 = sphi 0, %s299
    %s317 = sphi 0, %s317
    %s319 = sphi 0, %s317
    %s320 = sphi 0, %s319
    %s334 = sphi 0, %s320
    %s338 = sphi 0, %s338
    %s340 = sphi 0, %s338
    %s341 = sphi 0, %s340
    %s355 = sphi 0, %s341
    %s359 = sphi 0, %s359
    %s361 = sphi 0, %s359
    %s362 = sphi 0, %s361
    %s376 = sphi 0, %s362
    %s380 = sphi 0, %s380
    %s382 = sphi 0, %s380
    %s383 = sphi 0, %s382
    %s397 = sphi 0, %s383
    %s405 = sphi 0, %s407
    %s408 = sphi 0, %s405
    %s409 = sphi 0, %s408
    %s425 = sphi 0, %s409
    %s433 = sphi 0, %s435
    %s436 = sphi 0, %s433
    %s437 = sphi 0, %s436
    %s453 = sphi 0, %s437
  $region4: #{mixer_ts_decoder_forward.3} parent=0 // loop_header_branch
    %27 = sbr.rel (%p25) target = $region8
  $region5: #{mixer_ts_decoder_forward.3} parent=0 // loop_body
    %s29 = ssub.s32 %s24, 1
    %s30 = ssub.s32 %s24, 2
    %s37 = sadd.s32 1, %s32
    %p38 = scmp.ge.s32.totalorder %s37, 1
    %s39 = scalar_select %p38, 0, %s37
    %s40 = sadd.s32 1, %s31
    %s41 = scalar_select %p38, %s40, %s31
    %p42 = scmp.ge.s32.totalorder %s41, 2
    %s43 = scalar_select %p42, 0, %s41
    %s44 = ssub.s32 %s31, %s43
    %s45 = ssub.s32 %s32, %s39
    %s46 = sor.u32 %s44, %s45
    %p47 = scmp.eq.s32.totalorder %s46, 0
    %s49 = sadd.s32 %s48, 1
    %s50 = scalar_select %p47, %s48, %s49
    %p53 = pneg %p47
    %p54 = scmp.eq.s32.totalorder %s24, 1
    %p55 = por %p53, %p54
    %p56 = scmp.ne.s32.totalorder %s48, %s51
    %p57 = scmp.eq.s32.totalorder %s24, 0
    %p58 = por %p56, %p57
    %p59 = scmp.ne.s32.totalorder %s48, %s51
    %p60 = scmp.eq.s32.totalorder %s29, 1
    %p61 = por %p59, %p60
    %p62 = scmp.ne.s32.totalorder %s51, %s52
    %p63 = scmp.eq.s32.totalorder %s29, 0
    %p64 = por %p62, %p63
    %p65 = scmp.ne.s32.totalorder %s51, %s52
    %p66 = scmp.eq.s32.totalorder %s30, 1
    %p67 = por %p65, %p66
    %p69 = scmp.ne.s32.totalorder %s52, %s68
    %p70 = scmp.eq.s32.totalorder %s30, 0
    %p71 = por %p69, %p70
    %s72 = ssub.s32 %s31, %s43
    %s73 = ssub.s32 %s32, %s39
    %s74 = sor.u32 %s72, %s73
    %p75 = scmp.eq.s32.totalorder %s74, 0
    %s77 = sadd.s32 %s76, 1
    %s78 = scalar_select %p75, %s76, %s77
    %p81 = pneg %p75
    %p82 = scmp.eq.s32.totalorder %s24, 1
    %p83 = por %p81, %p82
    %p84 = scmp.ne.s32.totalorder %s76, %s79
    %p85 = scmp.eq.s32.totalorder %s24, 0
    %p86 = por %p84, %p85
    %p87 = scmp.ne.s32.totalorder %s76, %s79
    %p88 = scmp.eq.s32.totalorder %s29, 1
    %p89 = por %p87, %p88
    %p90 = scmp.ne.s32.totalorder %s79, %s80
    %p91 = scmp.eq.s32.totalorder %s29, 0
    %p92 = por %p90, %p91
    %p93 = scmp.ne.s32.totalorder %s79, %s80
    %p94 = scmp.eq.s32.totalorder %s30, 1
    %p95 = por %p93, %p94
    %p97 = scmp.ne.s32.totalorder %s80, %s96
    %p98 = scmp.eq.s32.totalorder %s30, 0
    %p99 = por %p97, %p98
    %s100 = ssub.s32 %s31, %s43
    %s101 = ssub.s32 %s32, %s39
    %s102 = sor.u32 %s100, %s101
    %p103 = scmp.eq.s32.totalorder %s102, 0
    %s105 = sadd.s32 %s104, 1
    %s106 = scalar_select %p103, %s104, %s105
    %p109 = pneg %p103
    %p110 = scmp.eq.s32.totalorder %s24, 1
    %p111 = por %p109, %p110
    %p112 = scmp.ne.s32.totalorder %s104, %s107
    %p113 = scmp.eq.s32.totalorder %s24, 0
    %p114 = por %p112, %p113
    %p115 = scmp.ne.s32.totalorder %s104, %s107
    %p116 = scmp.eq.s32.totalorder %s29, 1
    %p117 = por %p115, %p116
    %p118 = scmp.ne.s32.totalorder %s107, %s108
    %p119 = scmp.eq.s32.totalorder %s29, 0
    %p120 = por %p118, %p119
    %p121 = scmp.ne.s32.totalorder %s107, %s108
    %p122 = scmp.eq.s32.totalorder %s30, 1
    %p123 = por %p121, %p122
    %p125 = scmp.ne.s32.totalorder %s108, %s124
    %p126 = scmp.eq.s32.totalorder %s30, 0
    %p127 = por %p125, %p126
    %s129 = sadd.s32 %s128, 1
    %p132 = scmp.eq.s32.totalorder %s24, 1
    %p133 = scmp.ne.s32.totalorder %s128, %s130
    %p134 = scmp.eq.s32.totalorder %s24, 0
    %p135 = por %p133, %p134
    %p136 = scmp.ne.s32.totalorder %s128, %s130
    %p137 = scmp.eq.s32.totalorder %s29, 1
    %p138 = por %p136, %p137
    %p139 = scmp.ne.s32.totalorder %s130, %s131
    %p140 = scmp.eq.s32.totalorder %s29, 0
    %p141 = por %p139, %p140
    %p142 = scmp.ne.s32.totalorder %s130, %s131
    %p143 = scmp.eq.s32.totalorder %s30, 1
    %p144 = por %p142, %p143
    %p146 = scmp.ne.s32.totalorder %s131, %s145
    %p147 = scmp.eq.s32.totalorder %s30, 0
    %p148 = por %p146, %p147
    %s150 = sadd.s32 %s149, 1
    %p153 = scmp.eq.s32.totalorder %s24, 1
    %p154 = scmp.ne.s32.totalorder %s149, %s151
    %p155 = scmp.eq.s32.totalorder %s24, 0
    %p156 = por %p154, %p155
    %p157 = scmp.ne.s32.totalorder %s149, %s151
    %p158 = scmp.eq.s32.totalorder %s29, 1
    %p159 = por %p157, %p158
    %p160 = scmp.ne.s32.totalorder %s151, %s152
    %p161 = scmp.eq.s32.totalorder %s29, 0
    %p162 = por %p160, %p161
    %p163 = scmp.ne.s32.totalorder %s151, %s152
    %p164 = scmp.eq.s32.totalorder %s30, 1
    %p165 = por %p163, %p164
    %p167 = scmp.ne.s32.totalorder %s152, %s166
    %p168 = scmp.eq.s32.totalorder %s30, 0
    %p169 = por %p167, %p168
    %s171 = sadd.s32 %s170, 1
    %p174 = scmp.eq.s32.totalorder %s24, 1
    %p175 = scmp.ne.s32.totalorder %s170, %s172
    %p176 = scmp.eq.s32.totalorder %s24, 0
    %p177 = por %p175, %p176
    %p178 = scmp.ne.s32.totalorder %s170, %s172
    %p179 = scmp.eq.s32.totalorder %s29, 1
    %p180 = por %p178, %p179
    %p181 = scmp.ne.s32.totalorder %s172, %s173
    %p182 = scmp.eq.s32.totalorder %s29, 0
    %p183 = por %p181, %p182
    %p184 = scmp.ne.s32.totalorder %s172, %s173
    %p185 = scmp.eq.s32.totalorder %s30, 1
    %p186 = por %p184, %p185
    %p188 = scmp.ne.s32.totalorder %s173, %s187
    %p189 = scmp.eq.s32.totalorder %s30, 0
    %p190 = por %p188, %p189
    %s192 = sadd.s32 %s191, 1
    %p195 = scmp.eq.s32.totalorder %s24, 1
    %p196 = scmp.ne.s32.totalorder %s191, %s193
    %p197 = scmp.eq.s32.totalorder %s24, 0
    %p198 = por %p196, %p197
    %p199 = scmp.ne.s32.totalorder %s191, %s193
    %p200 = scmp.eq.s32.totalorder %s29, 1
    %p201 = por %p199, %p200
    %p202 = scmp.ne.s32.totalorder %s193, %s194
    %p203 = scmp.eq.s32.totalorder %s29, 0
    %p204 = por %p202, %p203
    %p205 = scmp.ne.s32.totalorder %s193, %s194
    %p206 = scmp.eq.s32.totalorder %s30, 1
    %p207 = por %p205, %p206
    %p209 = scmp.ne.s32.totalorder %s194, %s208
    %p210 = scmp.eq.s32.totalorder %s30, 0
    %p211 = por %p209, %p210
    %s213 = sadd.s32 %s212, 1
    %p216 = scmp.eq.s32.totalorder %s24, 1
    %p217 = scmp.ne.s32.totalorder %s212, %s214
    %p218 = scmp.eq.s32.totalorder %s24, 0
    %p219 = por %p217, %p218
    %p220 = scmp.ne.s32.totalorder %s212, %s214
    %p221 = scmp.eq.s32.totalorder %s29, 1
    %p222 = por %p220, %p221
    %p223 = scmp.ne.s32.totalorder %s214, %s215
    %p224 = scmp.eq.s32.totalorder %s29, 0
    %p225 = por %p223, %p224
    %p226 = scmp.ne.s32.totalorder %s214, %s215
    %p227 = scmp.eq.s32.totalorder %s30, 1
    %p228 = por %p226, %p227
    %p230 = scmp.ne.s32.totalorder %s215, %s229
    %p231 = scmp.eq.s32.totalorder %s30, 0
    %p232 = por %p230, %p231
    %s234 = sadd.s32 %s233, 1
    %p237 = scmp.eq.s32.totalorder %s24, 1
    %p238 = scmp.ne.s32.totalorder %s233, %s235
    %p239 = scmp.eq.s32.totalorder %s24, 0
    %p240 = por %p238, %p239
    %p241 = scmp.ne.s32.totalorder %s233, %s235
    %p242 = scmp.eq.s32.totalorder %s29, 1
    %p243 = por %p241, %p242
    %p244 = scmp.ne.s32.totalorder %s235, %s236
    %p245 = scmp.eq.s32.totalorder %s29, 0
    %p246 = por %p244, %p245
    %p247 = scmp.ne.s32.totalorder %s235, %s236
    %p248 = scmp.eq.s32.totalorder %s30, 1
    %p249 = por %p247, %p248
    %p251 = scmp.ne.s32.totalorder %s236, %s250
    %p252 = scmp.eq.s32.totalorder %s30, 0
    %p253 = por %p251, %p252
    %s255 = sadd.s32 %s254, 1
    %p258 = scmp.eq.s32.totalorder %s24, 1
    %p259 = scmp.ne.s32.totalorder %s254, %s256
    %p260 = scmp.eq.s32.totalorder %s24, 0
    %p261 = por %p259, %p260
    %p262 = scmp.ne.s32.totalorder %s254, %s256
    %p263 = scmp.eq.s32.totalorder %s29, 1
    %p264 = por %p262, %p263
    %p265 = scmp.ne.s32.totalorder %s256, %s257
    %p266 = scmp.eq.s32.totalorder %s29, 0
    %p267 = por %p265, %p266
    %p268 = scmp.ne.s32.totalorder %s256, %s257
    %p269 = scmp.eq.s32.totalorder %s30, 1
    %p270 = por %p268, %p269
    %p272 = scmp.ne.s32.totalorder %s257, %s271
    %p273 = scmp.eq.s32.totalorder %s30, 0
    %p274 = por %p272, %p273
    %s276 = sadd.s32 %s275, 1
    %p279 = scmp.eq.s32.totalorder %s24, 1
    %p280 = scmp.ne.s32.totalorder %s275, %s277
    %p281 = scmp.eq.s32.totalorder %s24, 0
    %p282 = por %p280, %p281
    %p283 = scmp.ne.s32.totalorder %s275, %s277
    %p284 = scmp.eq.s32.totalorder %s29, 1
    %p285 = por %p283, %p284
    %p286 = scmp.ne.s32.totalorder %s277, %s278
    %p287 = scmp.eq.s32.totalorder %s29, 0
    %p288 = por %p286, %p287
    %p289 = scmp.ne.s32.totalorder %s277, %s278
    %p290 = scmp.eq.s32.totalorder %s30, 1
    %p291 = por %p289, %p290
    %p293 = scmp.ne.s32.totalorder %s278, %s292
    %p294 = scmp.eq.s32.totalorder %s30, 0
    %p295 = por %p293, %p294
    %s297 = sadd.s32 %s296, 1
    %p300 = scmp.eq.s32.totalorder %s24, 1
    %p301 = scmp.ne.s32.totalorder %s296, %s298
    %p302 = scmp.eq.s32.totalorder %s24, 0
    %p303 = por %p301, %p302
    %p304 = scmp.ne.s32.totalorder %s296, %s298
    %p305 = scmp.eq.s32.totalorder %s29, 1
    %p306 = por %p304, %p305
    %p307 = scmp.ne.s32.totalorder %s298, %s299
    %p308 = scmp.eq.s32.totalorder %s29, 0
    %p309 = por %p307, %p308
    %p310 = scmp.ne.s32.totalorder %s298, %s299
    %p311 = scmp.eq.s32.totalorder %s30, 1
    %p312 = por %p310, %p311
    %p314 = scmp.ne.s32.totalorder %s299, %s313
    %p315 = scmp.eq.s32.totalorder %s30, 0
    %p316 = por %p314, %p315
    %s318 = sadd.s32 %s317, 1
    %p321 = scmp.eq.s32.totalorder %s24, 1
    %p322 = scmp.ne.s32.totalorder %s317, %s319
    %p323 = scmp.eq.s32.totalorder %s24, 0
    %p324 = por %p322, %p323
    %p325 = scmp.ne.s32.totalorder %s317, %s319
    %p326 = scmp.eq.s32.totalorder %s29, 1
    %p327 = por %p325, %p326
    %p328 = scmp.ne.s32.totalorder %s319, %s320
    %p329 = scmp.eq.s32.totalorder %s29, 0
    %p330 = por %p328, %p329
    %p331 = scmp.ne.s32.totalorder %s319, %s320
    %p332 = scmp.eq.s32.totalorder %s30, 1
    %p333 = por %p331, %p332
    %p335 = scmp.ne.s32.totalorder %s320, %s334
    %p336 = scmp.eq.s32.totalorder %s30, 0
    %p337 = por %p335, %p336
    %s339 = sadd.s32 %s338, 1
    %p342 = scmp.eq.s32.totalorder %s24, 1
    %p343 = scmp.ne.s32.totalorder %s338, %s340
    %p344 = scmp.eq.s32.totalorder %s24, 0
    %p345 = por %p343, %p344
    %p346 = scmp.ne.s32.totalorder %s338, %s340
    %p347 = scmp.eq.s32.totalorder %s29, 1
    %p348 = por %p346, %p347
    %p349 = scmp.ne.s32.totalorder %s340, %s341
    %p350 = scmp.eq.s32.totalorder %s29, 0
    %p351 = por %p349, %p350
    %p352 = scmp.ne.s32.totalorder %s340, %s341
    %p353 = scmp.eq.s32.totalorder %s30, 1
    %p354 = por %p352, %p353
    %p356 = scmp.ne.s32.totalorder %s341, %s355
    %p357 = scmp.eq.s32.totalorder %s30, 0
    %p358 = por %p356, %p357
    %s360 = sadd.s32 %s359, 1
    %p363 = scmp.eq.s32.totalorder %s24, 1
    %p364 = scmp.ne.s32.totalorder %s359, %s361
    %p365 = scmp.eq.s32.totalorder %s24, 0
    %p366 = por %p364, %p365
    %p367 = scmp.ne.s32.totalorder %s359, %s361
    %p368 = scmp.eq.s32.totalorder %s29, 1
    %p369 = por %p367, %p368
    %p370 = scmp.ne.s32.totalorder %s361, %s362
    %p371 = scmp.eq.s32.totalorder %s29, 0
    %p372 = por %p370, %p371
    %p373 = scmp.ne.s32.totalorder %s361, %s362
    %p374 = scmp.eq.s32.totalorder %s30, 1
    %p375 = por %p373, %p374
    %p377 = scmp.ne.s32.totalorder %s362, %s376
    %p378 = scmp.eq.s32.totalorder %s30, 0
    %p379 = por %p377, %p378
    %s381 = sadd.s32 %s380, 1
    %p384 = scmp.eq.s32.totalorder %s24, 1
    %p385 = scmp.ne.s32.totalorder %s380, %s382
    %p386 = scmp.eq.s32.totalorder %s24, 0
    %p387 = por %p385, %p386
    %p388 = scmp.ne.s32.totalorder %s380, %s382
    %p389 = scmp.eq.s32.totalorder %s29, 1
    %p390 = por %p388, %p389
    %p391 = scmp.ne.s32.totalorder %s382, %s383
    %p392 = scmp.eq.s32.totalorder %s29, 0
    %p393 = por %p391, %p392
    %p394 = scmp.ne.s32.totalorder %s382, %s383
    %p395 = scmp.eq.s32.totalorder %s30, 1
    %p396 = por %p394, %p395
    %p398 = scmp.ne.s32.totalorder %s383, %s397
    %p399 = scmp.eq.s32.totalorder %s30, 0
    %p400 = por %p398, %p399
    %s401 = ssub.s32 %s31, %s43
    %s402 = ssub.s32 %s32, %s39
    %s403 = sor.u32 %s401, %s402
    %p404 = scmp.eq.s32.totalorder %s403, 0
    %s406 = sadd.s32 %s405, 1
    %s407 = scalar_select %p404, %s405, %s406
    %p410 = pneg %p404
    %p411 = scmp.eq.s32.totalorder %s24, 1
    %p412 = por %p410, %p411
    %p413 = scmp.ne.s32.totalorder %s405, %s408
    %p414 = scmp.eq.s32.totalorder %s24, 0
    %p415 = por %p413, %p414
    %p416 = scmp.ne.s32.totalorder %s405, %s408
    %p417 = scmp.eq.s32.totalorder %s29, 1
    %p418 = por %p416, %p417
    %p419 = scmp.ne.s32.totalorder %s408, %s409
    %p420 = scmp.eq.s32.totalorder %s29, 0
    %p421 = por %p419, %p420
    %p422 = scmp.ne.s32.totalorder %s408, %s409
    %p423 = scmp.eq.s32.totalorder %s30, 1
    %p424 = por %p422, %p423
    %p426 = scmp.ne.s32.totalorder %s409, %s425
    %p427 = scmp.eq.s32.totalorder %s30, 0
    %p428 = por %p426, %p427
    %s429 = ssub.s32 %s31, %s43
    %s430 = ssub.s32 %s32, %s39
    %s431 = sor.u32 %s429, %s430
    %p432 = scmp.eq.s32.totalorder %s431, 0
    %s434 = sadd.s32 %s433, 1
    %s435 = scalar_select %p432, %s433, %s434
    %p438 = pneg %p432
    %p439 = scmp.eq.s32.totalorder %s24, 1
    %p440 = por %p438, %p439
    %p441 = scmp.ne.s32.totalorder %s433, %s436
    %p442 = scmp.eq.s32.totalorder %s24, 0
    %p443 = por %p441, %p442
    %p444 = scmp.ne.s32.totalorder %s433, %s436
    %p445 = scmp.eq.s32.totalorder %s29, 1
    %p446 = por %p444, %p445
    %p447 = scmp.ne.s32.totalorder %s436, %s437
    %p448 = scmp.eq.s32.totalorder %s29, 0
    %p449 = por %p447, %p448
    %p450 = scmp.ne.s32.totalorder %s436, %s437
    %p451 = scmp.eq.s32.totalorder %s30, 1
    %p452 = por %p450, %p451
    %p454 = scmp.ne.s32.totalorder %s437, %s453
    %p455 = scmp.eq.s32.totalorder %s30, 0
    %p456 = por %p454, %p455
    %p457 = scmp.le.s32.totalorder 1, %s24
    %p458 = scmp.lt.s32.totalorder %s24, 3
    %p459 = pnand %p457, %p458
    %p460 = pneg %p459
    // Predicated region
    $region9: #{mixer_ts_decoder_forward.3} parent=5 // pred_check
      _
    $region10: #{mixer_ts_decoder_forward.3} parent=5 // pred_check_branch
      %462 = sbr.rel (%p459) target = $region12
    $region11: #{mixer_ts_decoder_forward.3} parent=5 // pred_region
      %s463 = ssub.s32 %s24, 1
      // Predicated region
      $region13: #{mixer_ts_decoder_forward.3} parent=11 // pred_check
        %p464 = pneg %p141
      $region14: #{mixer_ts_decoder_forward.3} parent=11 // pred_check_branch
        %466 = sbr.rel (%p464) target = $region16
      $region15: #{mixer_ts_decoder_forward.3} parent=11 // pred_region
        _
      $region16: #{mixer_ts_decoder_forward.3} parent=11 // pred_fallthru
        _
      // Predicated region
      $region17: #{mixer_ts_decoder_forward.3} parent=11 // pred_check
        %p467 = pneg %p162
      $region18: #{mixer_ts_decoder_forward.3} parent=11 // pred_check_branch
        %469 = sbr.rel (%p467) target = $region20
      $region19: #{mixer_ts_decoder_forward.3} parent=11 // pred_region
        _
      $region20: #{mixer_ts_decoder_forward.3} parent=11 // pred_fallthru
        _
      // Predicated region
      $region21: #{mixer_ts_decoder_forward.3} parent=11 // pred_check
        %p470 = pneg %p183
      $region22: #{mixer_ts_decoder_forward.3} parent=11 // pred_check_branch
        %472 = sbr.rel (%p470) target = $region24
      $region23: #{mixer_ts_decoder_forward.3} parent=11 // pred_region
        _
      $region24: #{mixer_ts_decoder_forward.3} parent=11 // pred_fallthru
        _
      // Predicated region
      $region25: #{mixer_ts_decoder_forward.3} parent=11 // pred_check
        %p473 = pneg %p204
      $region26: #{mixer_ts_decoder_forward.3} parent=11 // pred_check_branch
        %475 = sbr.rel (%p473) target = $region28
      $region27: #{mixer_ts_decoder_forward.3} parent=11 // pred_region
        _
      $region28: #{mixer_ts_decoder_forward.3} parent=11 // pred_fallthru
        _
      // Predicated region
      $region29: #{mixer_ts_decoder_forward.3} parent=11 // pred_check
        %p476 = pneg %p225
      $region30: #{mixer_ts_decoder_forward.3} parent=11 // pred_check_branch
        %478 = sbr.rel (%p476) target = $region32
      $region31: #{mixer_ts_decoder_forward.3} parent=11 // pred_region
        _
      $region32: #{mixer_ts_decoder_forward.3} parent=11 // pred_fallthru
        _
      // Predicated region
      $region33: #{mixer_ts_decoder_forward.3} parent=11 // pred_check
        %p479 = pneg %p246
      $region34: #{mixer_ts_decoder_forward.3} parent=11 // pred_check_branch
        %481 = sbr.rel (%p479) target = $region36
      $region35: #{mixer_ts_decoder_forward.3} parent=11 // pred_region
        _
      $region36: #{mixer_ts_decoder_forward.3} parent=11 // pred_fallthru
        _
      // Predicated region
      $region37: #{mixer_ts_decoder_forward.3} parent=11 // pred_check
        %p482 = pneg %p267
      $region38: #{mixer_ts_decoder_forward.3} parent=11 // pred_check_branch
        %484 = sbr.rel (%p482) target = $region40
      $region39: #{mixer_ts_decoder_forward.3} parent=11 // pred_region
        _
      $region40: #{mixer_ts_decoder_forward.3} parent=11 // pred_fallthru
        _
      // Predicated region
      $region41: #{mixer_ts_decoder_forward.3} parent=11 // pred_check
        %p485 = pneg %p288
      $region42: #{mixer_ts_decoder_forward.3} parent=11 // pred_check_branch
        %487 = sbr.rel (%p485) target = $region44
      $region43: #{mixer_ts_decoder_forward.3} parent=11 // pred_region
        _
      $region44: #{mixer_ts_decoder_forward.3} parent=11 // pred_fallthru
        _
      // Predicated region
      $region45: #{mixer_ts_decoder_forward.3} parent=11 // pred_check
        %p488 = pneg %p309
      $region46: #{mixer_ts_decoder_forward.3} parent=11 // pred_check_branch
        %490 = sbr.rel (%p488) target = $region48
      $region47: #{mixer_ts_decoder_forward.3} parent=11 // pred_region
        _
      $region48: #{mixer_ts_decoder_forward.3} parent=11 // pred_fallthru
        _
      // Predicated region
      $region49: #{mixer_ts_decoder_forward.3} parent=11 // pred_check
        %p491 = pneg %p330
      $region50: #{mixer_ts_decoder_forward.3} parent=11 // pred_check_branch
        %493 = sbr.rel (%p491) target = $region52
      $region51: #{mixer_ts_decoder_forward.3} parent=11 // pred_region
        _
      $region52: #{mixer_ts_decoder_forward.3} parent=11 // pred_fallthru
        _
      // Predicated region
      $region53: #{mixer_ts_decoder_forward.3} parent=11 // pred_check
        %p494 = pneg %p351
      $region54: #{mixer_ts_decoder_forward.3} parent=11 // pred_check_branch
        %496 = sbr.rel (%p494) target = $region56
      $region55: #{mixer_ts_decoder_forward.3} parent=11 // pred_region
        _
      $region56: #{mixer_ts_decoder_forward.3} parent=11 // pred_fallthru
        _
      // Predicated region
      $region57: #{mixer_ts_decoder_forward.3} parent=11 // pred_check
        %p497 = pneg %p372
      $region58: #{mixer_ts_decoder_forward.3} parent=11 // pred_check_branch
        %499 = sbr.rel (%p497) target = $region60
      $region59: #{mixer_ts_decoder_forward.3} parent=11 // pred_region
        _
      $region60: #{mixer_ts_decoder_forward.3} parent=11 // pred_fallthru
        _
      // Predicated region
      $region61: #{mixer_ts_decoder_forward.3} parent=11 // pred_check
        %p500 = pneg %p393
      $region62: #{mixer_ts_decoder_forward.3} parent=11 // pred_check_branch
        %502 = sbr.rel (%p500) target = $region64
      $region63: #{mixer_ts_decoder_forward.3} parent=11 // pred_region
        _
      $region64: #{mixer_ts_decoder_forward.3} parent=11 // pred_fallthru
        _
    $region12: #{mixer_ts_decoder_forward.3} parent=5 // pred_fallthru
      _
    %p503 = scmp.lt.s32.totalorder %s24, 2
    // Predicated region
    $region65: #{mixer_ts_decoder_forward.3} parent=5 // pred_check
      %p504 = pneg %p503
    $region66: #{mixer_ts_decoder_forward.3} parent=5 // pred_check_branch
      %506 = sbr.rel (%p504) target = $region68
    $region67: #{mixer_ts_decoder_forward.3} parent=5 // pred_region
      // Predicated region
      $region69: #{mixer_ts_decoder_forward.3} parent=67 // pred_check
        %p507 = pneg %p58
      $region70: #{mixer_ts_decoder_forward.3} parent=67 // pred_check_branch
        %509 = sbr.rel (%p507) target = $region72
      $region71: #{mixer_ts_decoder_forward.3} parent=67 // pred_region
        %p510 = scmp.lt.s32.totalorder %s31, 1
        %s511 = scalar_select %p510, %s31, 1
        %p512 = scmp.lt.s32.totalorder %s32, 0
        %s513 = scalar_select %p512, %s32, 0
        %s514 = sadd.s32 %s513, %s511
        %s515 = smul.addr %s514, 8
        %s516 = scalar_lea.vmem %s0, %s515
      $region72: #{mixer_ts_decoder_forward.3} parent=67 // pred_fallthru
        _
      // Predicated region
      $region73: #{mixer_ts_decoder_forward.3} parent=67 // pred_check
        %p517 = pneg %p86
      $region74: #{mixer_ts_decoder_forward.3} parent=67 // pred_check_branch
        %519 = sbr.rel (%p517) target = $region76
      $region75: #{mixer_ts_decoder_forward.3} parent=67 // pred_region
        %p520 = scmp.lt.s32.totalorder %s31, 1
        %s521 = scalar_select %p520, %s31, 1
        %p522 = scmp.lt.s32.totalorder %s32, 0
        %s523 = scalar_select %p522, %s32, 0
        %s524 = sadd.s32 %s523, %s521
        %s525 = smul.addr %s524, 8
        %s526 = scalar_lea.vmem %s1, %s525
      $region76: #{mixer_ts_decoder_forward.3} parent=67 // pred_fallthru
        _
      // Predicated region
      $region77: #{mixer_ts_decoder_forward.3} parent=67 // pred_check
        %p527 = pneg %p114
      $region78: #{mixer_ts_decoder_forward.3} parent=67 // pred_check_branch
        %529 = sbr.rel (%p527) target = $region80
      $region79: #{mixer_ts_decoder_forward.3} parent=67 // pred_region
        %p530 = scmp.lt.s32.totalorder %s31, 1
        %s531 = scalar_select %p530, %s31, 1
        %p532 = scmp.lt.s32.totalorder %s32, 0
        %s533 = scalar_select %p532, %s32, 0
        %s534 = sadd.s32 %s533, %s531
        %s535 = smul.addr %s534, 8
        %s536 = scalar_lea.vmem %s2, %s535
      $region80: #{mixer_ts_decoder_forward.3} parent=67 // pred_fallthru
        _
    $region68: #{mixer_ts_decoder_forward.3} parent=5 // pred_fallthru
      _
    %p537 = scmp.le.s32.totalorder 1, %s24
    %p538 = scmp.lt.s32.totalorder %s24, 3
    %p539 = pnand %p537, %p538
    %p540 = pneg %p539
    // Predicated region
    $region81: #{mixer_ts_decoder_forward.3} parent=5 // pred_check
      _
    $region82: #{mixer_ts_decoder_forward.3} parent=5 // pred_check_branch
      %542 = sbr.rel (%p539) target = $region84
    $region83: #{mixer_ts_decoder_forward.3} parent=5 // pred_region
      %s543 = ssub.s32 %s24, 1
      %p544 = scmp.lt.s32.totalorder %s33, 1
      %s545 = scalar_select %p544, %s33, 1
      %p546 = scmp.lt.s32.totalorder %s34, 0
      %s547 = scalar_select %p546, %s34, 0
      %s548 = sadd.s32 %s547, %s545
      %s549 = smul.addr %s548, 8
      %s550 = scalar_lea.vmem %s0, %s549
      %p551 = pneg %p64
      %p552 = pneg %p61
      %p553 = scmp.lt.s32.totalorder %s33, 1
      %s554 = scalar_select %p553, %s33, 1
      %p555 = scmp.lt.s32.totalorder %s34, 0
      %s556 = scalar_select %p555, %s34, 0
      %s557 = sadd.s32 %s556, %s554
      %s558 = smul.addr %s557, 8
      %s559 = scalar_lea.vmem %s1, %s558
      %p560 = pneg %p92
      %p561 = pneg %p89
      %p562 = scmp.lt.s32.totalorder %s33, 1
      %s563 = scalar_select %p562, %s33, 1
      %p564 = scmp.lt.s32.totalorder %s34, 0
      %s565 = scalar_select %p564, %s34, 0
      %s566 = sadd.s32 %s565, %s563
      %s567 = smul.addr %s566, 8
      %s568 = scalar_lea.vmem %s2, %s567
      %p569 = pneg %p120
      %p570 = pneg %p117
      %p571 = pneg %p141
      %p572 = pneg %p138
      %p573 = pneg %p162
      %p574 = pneg %p159
      %p575 = pneg %p183
      %p576 = pneg %p180
      %p577 = pneg %p204
      %p578 = pneg %p201
      %p579 = pneg %p225
      %p580 = pneg %p222
      %p581 = pneg %p246
      %p582 = pneg %p243
      %p583 = pneg %p267
      %p584 = pneg %p264
      %p585 = pneg %p288
      %p586 = pneg %p285
      %p587 = pneg %p309
      %p588 = pneg %p306
      %p589 = pneg %p330
      %p590 = pneg %p327
      %p591 = pneg %p351
      %p592 = pneg %p348
      %p593 = pneg %p372
      %p594 = pneg %p369
      %p595 = pneg %p393
      %p596 = pneg %p390
      %p597 = pneg %p421
      %p598 = pneg %p418
      %p599 = scmp.lt.s32.totalorder %s33, 1
      %s600 = scalar_select %p599, %s33, 1
      %p601 = scmp.lt.s32.totalorder %s34, 0
      %s602 = scalar_select %p601, %s34, 0
      %s603 = sadd.s32 %s602, %s600
      %s604 = smul.addr %s603, 8
      %s605 = scalar_lea.vmem %s16, %s604
      %p606 = pneg %p449
      %p607 = pneg %p446
      %p608 = scmp.lt.s32.totalorder %s33, 1
      %s609 = scalar_select %p608, %s33, 1
      %p610 = scmp.lt.s32.totalorder %s34, 0
      %s611 = scalar_select %p610, %s34, 0
      %s612 = sadd.s32 %s611, %s609
      %s613 = smul.addr %s612, 8
      %s614 = scalar_lea.vmem %s17, %s613
      %p615 = scmp.lt.s32.totalorder %s33, 1
      %s616 = scalar_select %p615, %s33, 1
      %p617 = scmp.lt.s32.totalorder %s34, 0
      %s618 = scalar_select %p617, %s34, 0
      %s619 = sadd.s32 %s618, %s616
      %s620 = smul.addr %s619, 8
      %s621 = scalar_lea.vmem %s0, %s620
      %p622 = scmp.lt.s32.totalorder %s33, 1
      %s623 = scalar_select %p622, %s33, 1
      %p624 = scmp.lt.s32.totalorder %s34, 0
      %s625 = scalar_select %p624, %s34, 0
      %s626 = sadd.s32 %s625, %s623
      %s627 = smul.addr %s626, 8
      %s628 = scalar_lea.vmem %s1, %s627
      %p629 = scmp.lt.s32.totalorder %s33, 1
      %s630 = scalar_select %p629, %s33, 1
      %p631 = scmp.lt.s32.totalorder %s34, 0
      %s632 = scalar_select %p631, %s34, 0
      %s633 = sadd.s32 %s632, %s630
      %s634 = smul.addr %s633, 8
      %s635 = scalar_lea.vmem %s2, %s634
      %p636 = scmp.lt.s32.totalorder %s33, 1
      %s637 = scalar_select %p636, %s33, 1
      %p638 = scmp.lt.s32.totalorder %s34, 0
      %s639 = scalar_select %p638, %s34, 0
      %s640 = sadd.s32 %s639, %s637
      %s641 = smul.addr %s640, 8
      %s642 = scalar_lea.vmem %s16, %s641
      %p643 = scmp.lt.s32.totalorder %s33, 1
      %s644 = scalar_select %p643, %s33, 1
      %p645 = scmp.lt.s32.totalorder %s34, 0
      %s646 = scalar_select %p645, %s34, 0
      %s647 = sadd.s32 %s646, %s644
      %s648 = smul.addr %s647, 8
      %s649 = scalar_lea.vmem %s17, %s648
      %p651 = scmp.eq.s32.totalorder %s34, 0
      // Predicated region
      $region85: #{mixer_ts_decoder_forward.3} parent=83 // pred_check
        %p652 = pneg %p651
      $region86: #{mixer_ts_decoder_forward.3} parent=83 // pred_check_branch
        %654 = sbr.rel (%p652) target = $region88
      $region87: #{mixer_ts_decoder_forward.3} parent=83 // pred_region
        %vm655 = vcmask 523264
        %656 = vst.msk [vmem:[#allocation7] sm:$0xff] %vm655, 0.0
        %657 = vst.msk [vmem:[#allocation2] sm:$0xff] %vm655, 0.0
      $region88: #{mixer_ts_decoder_forward.3} parent=83 // pred_fallthru
        _
      %v658 = vld [vmem:[%s621] sm:$0xff]
      %v659 = vld [vmem:[%s628] sm:$0xff]
      %v660 = vadd.f32 %v658, %v659
      %vm661 = vcmask 261120
      %662 = vst.msk [vmem:[%s649] sm:$0xff] %vm661, %v660
      %v663 = vld [vmem:[%s3] sm:$0x1]
      %v664 = vld [vmem:[%s4] sm:$0x1]
      %v665 = vsel %vm661, %v660, 0.0
      %666 = vadd.xlane.f32.xlu0 %v665
      %v667 = vpop.xlane.xlu0 %666
      %v668 = vrcp.pop 32.0
      %v669 = vmul.f32 %v667, %v668
      %v670 = vsub.f32 %v660, %v669
      %v671 = vmul.f32 %v670, %v670
      %v672 = vsel %vm661, %v671, 0.0
      %673 = vadd.xlane.f32.xlu0 %v672
      %v674 = vpop.xlane.xlu0 %673
      %v675 = vmul.f32 %v674, %v668
      %v676 = vadd.f32 %v675, 1e-05
      %v677 = vrsqrt.pop %v676
      %v678 = vmul.f32 %v670, %v677
      %v680 = vlaneseq
      %v681 = vshrl.u32 %v680, 7
      %v682 = vsub.s32 0, %v681
      %v683 = vrot.slane %v663, %v682
      %v685 = vmul.f32 %v678, %v683
      %v687 = vlaneseq
      %v688 = vshrl.u32 %v687, 7
      %v689 = vsub.s32 0, %v688
      %v690 = vrot.slane %v664, %v689
      %v692 = vadd.f32 %v685, %v690
      %v693 = vpack.c.bf16 %v692, %v692
      %v694 = vld [vmem:[%s635] sm:$0xff]
      %v695 = vpack.c.bf16 %v694, %v694
      %v696 = vld [vmem:[%s5] sm:$0xf]
      %v697 = vld [vmem:[%s5 + $0x4] sm:$0xf]
      %v698 = vld [vmem:[%s5 + $0x8] sm:$0xf]
      %v699 = vld [vmem:[%s5 + $0xc] sm:$0xf]
      %v704 = vunpack.c.l.b16 %v696
      %v705 = vunpack.c.l.b16 %v697
      %v706 = vunpack.c.l.b16 %v698
      %v707 = vunpack.c.l.b16 %v699
      %v708 = vpack.c.b16 %v705, %v704
      %v709 = vpack.c.b16 %v707, %v706
      %v713 = vsel %vm661, %v693, 0
      %715 = vmatprep.subr.bf16.mxu0 0
      %716 = vmatpush1.bf16.msra.mxu0 %v708
      %717 = vmatprep.subr.bf16.mxu0 0
      %718 = vmatpush1.bf16.msra.mxu0 %v709
      %719 = vmatprep.subr.bf16.mxu0 0
      %720 = vmatpush1.bf16.msra.mxu0 0
      %721 = vmatprep.subr.bf16.mxu0 0
      %722 = vmatpush1.bf16.msra.mxu0 0
      %723 = vmatprep.subr.bf16.mxu0 0
      %724 = vmatpush1.bf16.msra.mxu0 0
      %725 = vmatprep.subr.bf16.mxu0 0
      %726 = vmatpush1.bf16.msra.mxu0 0
      %727 = vmatprep.subr.bf16.mxu0 0
      %728 = vmatpush1.bf16.msra.mxu0 0
      %729 = vmatprep.subr.bf16.mxu0 0
      %730 = vmatpush1.bf16.msra.mxu0 0
      %731 = vmatprep.subr.bf16.mxu0 0
      %732 = vmatpush1.bf16.msra.mxu0 0
      %733 = vmatprep.subr.bf16.mxu0 0
      %734 = vmatpush1.bf16.msra.mxu0 0
      %735 = vmatprep.subr.bf16.mxu0 0
      %736 = vmatpush1.bf16.msra.mxu0 0
      %737 = vmatprep.subr.bf16.mxu0 0
      %738 = vmatpush1.bf16.msra.mxu0 0
      %739 = vmatprep.subr.bf16.mxu0 0
      %740 = vmatpush1.bf16.msra.mxu0 0
      %741 = vmatprep.subr.bf16.mxu0 0
      %742 = vmatpush1.bf16.msra.mxu0 0
      %743 = vmatprep.subr.bf16.mxu0 0
      %744 = vmatpush1.bf16.msra.mxu0 0
      %745 = vmatprep.subr.bf16.mxu0 0
      %746 = vmatpush1.bf16.msra.mxu0 0
      %747 = vmatprep.mubr.bf16.mxu0 0
      %748 = vmatmul.mubr.bf16.gmra.mrb[0].mxu0 %v713
      %v749 = vpop.f32.mrb[0].mxu0
      %v750 = vadd.f32 0.0, %v749
      %v751 = vpop.f32.mrb[0].mxu0
      %v752 = vpop.f32.mrb[0].mxu0
      %v753 = vpop.f32.mrb[0].mxu0
      %754 = vdwg.mxu0
      %vm755 = vcmask 523264
      %756 = vst.msk [vmem:[#allocation2 + $0x8] sm:$0xff] %vm755, %v750
      %v757 = vld [vmem:[%s7] sm:$0xf]
      %v758 = vlaneseq
      %v759 = vshrl.u32 %v758, 7
      %v760 = vsub.s32 3, %v759
      %v761 = vrot.slane %v757, %v760
      %v762 = vmul.f32 %v750, %v761
      %v763 = vld [vmem:[%s8] sm:$0x1]
      %v765 = vlaneseq
      %v766 = vshrl.u32 %v765, 7
      %v767 = vsub.s32 0, %v766
      %v768 = vrot.slane %v763, %v767
      %v770 = vadd.f32 %v762, %v768
      %v771 = vld [vmem:[#allocation2 + $0x5] sm:$0xff]
      %v772 = vlaneseq
      %v773 = vshrl.u32 %v772, 7
      %v774 = vsub.s32 0, %v773
      %v775 = vrot.slane %v757, %v774
      %v776 = vmul.f32 %v771, %v775
      %v777 = vadd.f32 %v770, %v776
      %v778 = vld [vmem:[#allocation2 + $0x6] sm:$0xff]
      %v779 = vlaneseq
      %v780 = vshrl.u32 %v779, 7
      %v781 = vsub.s32 1, %v780
      %v782 = vrot.slane %v757, %v781
      %v783 = vmul.f32 %v778, %v782
      %v784 = vadd.f32 %v777, %v783
      %v785 = vld [vmem:[#allocation2 + $0x7] sm:$0xff]
      %v786 = vlaneseq
      %v787 = vshrl.u32 %v786, 7
      %v788 = vsub.s32 2, %v787
      %v789 = vrot.slane %v757, %v788
      %v790 = vmul.f32 %v785, %v789
      %v791 = vadd.f32 %v784, %v790
      %v792 = vxor.u32 %v791, 2147483648
      %v793 = vmul.f32 %v792, 1.442695
      %v794 = vpow.pop %v793
      %v795 = vadd.f32 %v794, 1.0
      %v796 = vrcp.pop %v795
      %v797 = vmul.f32 1.0, %v796
      %v798 = vmul.f32 %v791, %v797
      %799 = vst.msk [vmem:[#allocation3] sm:$0xff] %vm755, %v798
      %v800 = vld [vmem:[#allocation2 + $0x8] sm:$0xff]
      %801 = vst.msk [vmem:[#allocation2] sm:$0xff] %vm755, %v800
      %v802 = vld [vmem:[%s9] sm:$0xf]
      %v803 = vld [vmem:[%s9 + $0x4] sm:$0xf]
      %v804 = vld [vmem:[%s9 + $0x8] sm:$0xf]
      %v805 = vld [vmem:[%s9 + $0xc] sm:$0xf]
      %v810 = vunpack.c.l.b16 %v802
      %v811 = vunpack.c.l.b16 %v803
      %v812 = vunpack.c.l.b16 %v804
      %v813 = vunpack.c.l.b16 %v805
      %v814 = vpack.c.b16 %v811, %v810
      %v815 = vpack.c.b16 %v813, %v812
      %v819 = vsel %vm661, %v695, 0
      %821 = vmatprep.subr.bf16.mxu0 0
      %822 = vmatpush1.bf16.msra.mxu0 %v814
      %823 = vmatprep.subr.bf16.mxu0 0
      %824 = vmatpush1.bf16.msra.mxu0 %v815
      %825 = vmatprep.subr.bf16.mxu0 0
      %826 = vmatpush1.bf16.msra.mxu0 0
      %827 = vmatprep.subr.bf16.mxu0 0
      %828 = vmatpush1.bf16.msra.mxu0 0
      %829 = vmatprep.subr.bf16.mxu0 0
      %830 = vmatpush1.bf16.msra.mxu0 0
      %831 = vmatprep.subr.bf16.mxu0 0
      %832 = vmatpush1.bf16.msra.mxu0 0
      %833 = vmatprep.subr.bf16.mxu0 0
      %834 = vmatpush1.bf16.msra.mxu0 0
      %835 = vmatprep.subr.bf16.mxu0 0
      %836 = vmatpush1.bf16.msra.mxu0 0
      %837 = vmatprep.subr.bf16.mxu0 0
      %838 = vmatpush1.bf16.msra.mxu0 0
      %839 = vmatprep.subr.bf16.mxu0 0
      %840 = vmatpush1.bf16.msra.mxu0 0
      %841 = vmatprep.subr.bf16.mxu0 0
      %842 = vmatpush1.bf16.msra.mxu0 0
      %843 = vmatprep.subr.bf16.mxu0 0
      %844 = vmatpush1.bf16.msra.mxu0 0
      %845 = vmatprep.subr.bf16.mxu0 0
      %846 = vmatpush1.bf16.msra.mxu0 0
      %847 = vmatprep.subr.bf16.mxu0 0
      %848 = vmatpush1.bf16.msra.mxu0 0
      %849 = vmatprep.subr.bf16.mxu0 0
      %850 = vmatpush1.bf16.msra.mxu0 0
      %851 = vmatprep.subr.bf16.mxu0 0
      %852 = vmatpush1.bf16.msra.mxu0 0
      %853 = vmatprep.mubr.bf16.mxu0 0
      %854 = vmatmul.mubr.bf16.gmra.mrb[0].mxu0 %v819
      %v855 = vpop.f32.mrb[0].mxu0
      %v856 = vadd.f32 0.0, %v855
      %v857 = vpop.f32.mrb[0].mxu0
      %v858 = vpop.f32.mrb[0].mxu0
      %v859 = vpop.f32.mrb[0].mxu0
      %860 = vdwg.mxu0
      %v861 = vpack.c.bf16 %v856, %v856
      %v862 = vld [vmem:[%s11] sm:$0x1]
      %v863 = vld [vmem:[%s12] sm:$0x1]
      %v865 = vlaneseq
      %v866 = vshrl.u32 %v865, 7
      %v867 = vsub.s32 0, %v866
      %v868 = vrot.slane %v863, %v867
      %vm870 = vcmask 15360
      %v872 = vsel %vm870, %v861, 0
      %vm874 = vcmask 1040384
      %v876 = vsel %vm874, %v862, 0
      %878 = vmatprep.subr.bf16.mxu0 0
      %879 = vmatpush1.bf16.msra.mxu0 %v876
      %880 = vmatprep.subr.bf16.mxu0 0
      %881 = vmatpush1.bf16.msra.mxu0 0
      %882 = vmatprep.subr.bf16.mxu0 0
      %883 = vmatpush1.bf16.msra.mxu0 0
      %884 = vmatprep.subr.bf16.mxu0 0
      %885 = vmatpush1.bf16.msra.mxu0 0
      %886 = vmatprep.subr.bf16.mxu0 0
      %887 = vmatpush1.bf16.msra.mxu0 0
      %888 = vmatprep.subr.bf16.mxu0 0
      %889 = vmatpush1.bf16.msra.mxu0 0
      %890 = vmatprep.subr.bf16.mxu0 0
      %891 = vmatpush1.bf16.msra.mxu0 0
      %892 = vmatprep.subr.bf16.mxu0 0
      %893 = vmatpush1.bf16.msra.mxu0 0
      %894 = vmatprep.subr.bf16.mxu0 0
      %895 = vmatpush1.bf16.msra.mxu0 0
      %896 = vmatprep.subr.bf16.mxu0 0
      %897 = vmatpush1.bf16.msra.mxu0 0
      %898 = vmatprep.subr.bf16.mxu0 0
      %899 = vmatpush1.bf16.msra.mxu0 0
      %900 = vmatprep.subr.bf16.mxu0 0
      %901 = vmatpush1.bf16.msra.mxu0 0
      %902 = vmatprep.subr.bf16.mxu0 0
      %903 = vmatpush1.bf16.msra.mxu0 0
      %904 = vmatprep.subr.bf16.mxu0 0
      %905 = vmatpush1.bf16.msra.mxu0 0
      %906 = vmatprep.subr.bf16.mxu0 0
      %907 = vmatpush1.bf16.msra.mxu0 0
      %908 = vmatprep.subr.bf16.mxu0 0
      %909 = vmatpush1.bf16.msra.mxu0 0
      %910 = vmatprep.mubr.bf16.mxu0 0
      %911 = vmatmul.mubr.bf16.gmra.mrb[0].mxu0 %v872
      %v912 = vpop.f32.mrb[0].mxu0
      %v913 = vadd.f32 %v868, %v912
      %v914 = vpop.f32.mrb[0].mxu0
      %v915 = vpop.f32.mrb[0].mxu0
      %v916 = vpop.f32.mrb[0].mxu0
      %917 = vdwg.mxu0
      %v918 = vmax.f32 %v913, 0.0
      %vm919 = vcmp.ne.f32.partialorder %v913, %v913
      %v920 = vadd.f32 %v913, 0.0
      %v921 = vand.u32 2147483647, %v913
      %v922 = vsub.f32 0.0, %v921
      %v923 = vmul.f32 %v922, 1.442695
      %v924 = vpow.pop %v923
      %v925 = vadd.f32 %v924, 1.0
      %v926 = vlog2.pop %v925
      %v927 = vmul.f32 %v926, 0.6931472
      %v928 = vmul.f32 -0.5, %v924
      %v929 = vadd.f32 %v928, 1.0
      %v930 = vmul.f32 %v929, %v924
      %v931 = vand.u32 2147483647, %v924
      %vm932 = vcmp.lt.f32.partialorder %v931, 0.0004427343
      %v933 = vsel %vm932, %v930, %v927
      %v934 = vadd.f32 %v918, %v933
      %v935 = vsel %vm919, %v920, %v934
      %936 = vst.msk [vmem:[#allocation4] sm:$0xff] %vm755, %v935
      %v937 = vld [vmem:[%s10] sm:$0xf]
      %v938 = vld [vmem:[%s10 + $0x4] sm:$0xf]
      %v939 = vld [vmem:[%s10 + $0x8] sm:$0xf]
      %v940 = vld [vmem:[%s10 + $0xc] sm:$0xf]
      %v945 = vunpack.c.l.b16 %v937
      %v946 = vunpack.c.l.b16 %v938
      %v947 = vunpack.c.l.b16 %v939
      %v948 = vunpack.c.l.b16 %v940
      %v949 = vpack.c.b16 %v946, %v945
      %v950 = vpack.c.b16 %v948, %v947
      %953 = vmatprep.subr.bf16.mxu0 0
      %954 = vmatpush1.bf16.msra.mxu0 %v949
      %955 = vmatprep.subr.bf16.mxu0 0
      %956 = vmatpush1.bf16.msra.mxu0 %v950
      %957 = vmatprep.subr.bf16.mxu0 0
      %958 = vmatpush1.bf16.msra.mxu0 0
      %959 = vmatprep.subr.bf16.mxu0 0
      %960 = vmatpush1.bf16.msra.mxu0 0
      %961 = vmatprep.subr.bf16.mxu0 0
      %962 = vmatpush1.bf16.msra.mxu0 0
      %963 = vmatprep.subr.bf16.mxu0 0
      %964 = vmatpush1.bf16.msra.mxu0 0
      %965 = vmatprep.subr.bf16.mxu0 0
      %966 = vmatpush1.bf16.msra.mxu0 0
      %967 = vmatprep.subr.bf16.mxu0 0
      %968 = vmatpush1.bf16.msra.mxu0 0
      %969 = vmatprep.subr.bf16.mxu0 0
      %970 = vmatpush1.bf16.msra.mxu0 0
      %971 = vmatprep.subr.bf16.mxu0 0
      %972 = vmatpush1.bf16.msra.mxu0 0
      %973 = vmatprep.subr.bf16.mxu0 0
      %974 = vmatpush1.bf16.msra.mxu0 0
      %975 = vmatprep.subr.bf16.mxu0 0
      %976 = vmatpush1.bf16.msra.mxu0 0
      %977 = vmatprep.subr.bf16.mxu0 0
      %978 = vmatpush1.bf16.msra.mxu0 0
      %979 = vmatprep.subr.bf16.mxu0 0
      %980 = vmatpush1.bf16.msra.mxu0 0
      %981 = vmatprep.subr.bf16.mxu0 0
      %982 = vmatpush1.bf16.msra.mxu0 0
      %983 = vmatprep.subr.bf16.mxu0 0
      %984 = vmatpush1.bf16.msra.mxu0 0
      %985 = vmatprep.mubr.bf16.mxu0 0
      %986 = vmatmul.mubr.bf16.gmra.mrb[0].mxu0 %v819
      %v987 = vpop.f32.mrb[0].mxu0
      %v988 = vadd.f32 0.0, %v987
      %v989 = vpop.f32.mrb[0].mxu0
      %v990 = vpop.f32.mrb[0].mxu0
      %v991 = vpop.f32.mrb[0].mxu0
      %992 = vdwg.mxu0
      %vm993 = vcmask 130048
      %994 = vst.msk [vmem:[#allocation5] sm:$0xff] %vm993, %v988
      %v995 = vld [vmem:[%s13] sm:$0xff]
      %v996 = vlaneseq
      %v997 = vshrl.u32 %v996, 7
      %v998 = vlaneseq
      %v999 = vand.u32 %v998, 127
      %vm1000 = vcmp.eq.s32.totalorder %v997, %v999
      %v1001 = vsel %vm1000, 1, 0
      %v1002 = vcvt.s32.f32 %v1001
      %v1003 = vld [vmem:[#allocation4] sm:$0xff]
      %v1004 = vld [vmem:[#allocation3] sm:$0xff]
      %v1005 = vmul.f32 %v1003, %v1004
      %v1007 = vcombine.high %v1003, %v1003
      %v1009 = vunpack.c.l.s4 1966171168
      %v1010 = vunpack.c.0.s8 %v1009
      %v1011 = vlaneseq
      %v1012 = vshrl.u32 %v1011, 7
      %v1013 = vsub.s32 %v1010, %v1012
      %v1014 = vrot.slane %v1003, %v1013
      %v1016 = vunpack.c.l.s4 1966171168
      %v1017 = vunpack.c.0.s8 %v1016
      %v1018 = vlaneseq
      %v1019 = vshrl.u32 %v1018, 7
      %v1020 = vsub.s32 %v1017, %v1019
      %v1021 = vrot.slane %v1007, %v1020
      %v1022 = vcombine.high %v1014, %v1014
      %v1023 = vcombine.high %v1021, %v1021
      %v1025 = vunpack.c.l.s4 1966171168
      %v1026 = vunpack.c.0.s8 %v1025
      %v1027 = vlaneseq
      %v1028 = vshrl.u32 %v1027, 7
      %v1029 = vsub.s32 %v1026, %v1028
      %v1030 = vrot.slane %v1014, %v1029
      %v1032 = vunpack.c.l.s4 1966171168
      %v1033 = vunpack.c.0.s8 %v1032
      %v1034 = vlaneseq
      %v1035 = vshrl.u32 %v1034, 7
      %v1036 = vsub.s32 %v1033, %v1035
      %v1037 = vrot.slane %v1021, %v1036
      %v1039 = vunpack.c.l.s4 1966171168
      %v1040 = vunpack.c.0.s8 %v1039
      %v1041 = vlaneseq
      %v1042 = vshrl.u32 %v1041, 7
      %v1043 = vsub.s32 %v1040, %v1042
      %v1044 = vrot.slane %v1022, %v1043
      %v1046 = vunpack.c.l.s4 1966171168
      %v1047 = vunpack.c.0.s8 %v1046
      %v1048 = vlaneseq
      %v1049 = vshrl.u32 %v1048, 7
      %v1050 = vsub.s32 %v1047, %v1049
      %v1051 = vrot.slane %v1023, %v1050
      %v1052 = vcombine.high %v1030, %v1030
      %v1053 = vcombine.high %v1037, %v1037
      %v1054 = vcombine.high %v1044, %v1044
      %v1055 = vcombine.high %v1051, %v1051
      %v1056 = vlaneseq
      %v1057 = vshrl.u32 %v1056, 7
      %v1058 = vsub.s32 0, %v1057
      %v1059 = vrot.slane %v1030, %v1058
      %v1060 = vlaneseq
      %v1061 = vshrl.u32 %v1060, 7
      %v1062 = vsub.s32 0, %v1061
      %v1063 = vrot.slane %v1044, %v1062
      %v1064 = vlaneseq
      %v1065 = vshrl.u32 %v1064, 7
      %v1066 = vsub.s32 0, %v1065
      %v1067 = vrot.slane %v1052, %v1066
      %v1068 = vlaneseq
      %v1069 = vshrl.u32 %v1068, 7
      %v1070 = vsub.s32 0, %v1069
      %v1071 = vrot.slane %v1054, %v1070
      %v1072 = vlaneseq
      %v1073 = vshrl.u32 %v1072, 7
      %v1074 = vsub.s32 0, %v1073
      %v1075 = vrot.slane %v1037, %v1074
      %v1076 = vlaneseq
      %v1077 = vshrl.u32 %v1076, 7
      %v1078 = vsub.s32 0, %v1077
      %v1079 = vrot.slane %v1051, %v1078
      %v1080 = vlaneseq
      %v1081 = vshrl.u32 %v1080, 7
      %v1082 = vsub.s32 0, %v1081
      %v1083 = vrot.slane %v1053, %v1082
      %v1084 = vlaneseq
      %v1085 = vshrl.u32 %v1084, 7
      %v1086 = vsub.s32 0, %v1085
      %v1087 = vrot.slane %v1055, %v1086
      %v1096 = vmul.f32 %v1059, %v995
      %v1097 = vmul.f32 %v1063, %v995
      %v1098 = vmul.f32 %v1067, %v995
      %v1099 = vmul.f32 %v1071, %v995
      %v1100 = vmul.f32 %v1075, %v995
      %v1101 = vmul.f32 %v1079, %v995
      %v1102 = vmul.f32 %v1083, %v995
      %v1103 = vmul.f32 %v1087, %v995
      %v1104 = vmul.f32 %v1096, 1.442695
      %v1105 = vpow.pop %v1104
      %v1106 = vmul.f32 %v1097, 1.442695
      %v1107 = vpow.pop %v1106
      %v1108 = vmul.f32 %v1098, 1.442695
      %v1109 = vpow.pop %v1108
      %v1110 = vmul.f32 %v1099, 1.442695
      %v1111 = vpow.pop %v1110
      %v1112 = vmul.f32 %v1100, 1.442695
      %v1113 = vpow.pop %v1112
      %v1114 = vmul.f32 %v1101, 1.442695
      %v1115 = vpow.pop %v1114
      %v1116 = vmul.f32 %v1102, 1.442695
      %v1117 = vpow.pop %v1116
      %v1118 = vmul.f32 %v1103, 1.442695
      %v1119 = vpow.pop %v1118
      %v1120 = vld [vmem:[#allocation5] sm:$0xff]
      %1121 = vxpose.xlu0.b32.start [1/16] %v1120, 128
      %1122 = vxpose.xlu0.b32.cont [2/16] 0.0, 128
      %1123 = vxpose.xlu0.b32.cont [3/16] 0.0, 128
      %1124 = vxpose.xlu0.b32.cont [4/16] 0.0, 128
      %1125 = vxpose.xlu0.b32.cont [5/16] 0.0, 128
      %1126 = vxpose.xlu0.b32.cont [6/16] 0.0, 128
      %1127 = vxpose.xlu0.b32.cont [7/16] 0.0, 128
      %1128 = vxpose.xlu0.b32.cont [8/16] 0.0, 128
      %1129 = vxpose.xlu0.b32.cont [9/16] 0.0, 128
      %1130 = vxpose.xlu0.b32.cont [10/16] 0.0, 128
      %1131 = vxpose.xlu0.b32.cont [11/16] 0.0, 128
      %1132 = vxpose.xlu0.b32.cont [12/16] 0.0, 128
      %1133 = vxpose.xlu0.b32.cont [13/16] 0.0, 128
      %1134 = vxpose.xlu0.b32.cont [14/16] 0.0, 128
      %1135 = vxpose.xlu0.b32.cont [15/16] 0.0, 128
      %1136 = vxpose.xlu0.b32.end [16/16] 0.0, 128
      %v1137 = vpop.trf.xlu0
      %v1138 = vpop.trf.xlu0
      %v1139 = vpop.trf.xlu0
      %v1140 = vpop.trf.xlu0
      %v1141 = vpop.trf.xlu0
      %v1142 = vpop.trf.xlu0
      %v1143 = vpop.trf.xlu0
      %v1144 = vpop.trf.xlu0
      %v1145 = vpop.trf.xlu0
      %v1146 = vpop.trf.xlu0
      %v1147 = vpop.trf.xlu0
      %v1148 = vpop.trf.xlu0
      %v1149 = vpop.trf.xlu0
      %v1150 = vpop.trf.xlu0
      %v1151 = vpop.trf.xlu0
      %v1152 = vpop.trf.xlu0
      %vm1153 = vcmask 64512
      %v1155 = vsel %vm1153, %v1137, 0
      %v1158 = vsel %vm1153, %v1138, 0
      %1160 = vmatprep.subr.mxu0 0.0
      %1161 = vmatpush1.msra.mxu0 %v1002
      %1162 = vmatprep.subr.mxu0 0.0
      %1163 = vmatpush1.msra.mxu0 0.0
      %1164 = vmatprep.subr.mxu0 0.0
      %1165 = vmatpush1.msra.mxu0 0.0
      %1166 = vmatprep.subr.mxu0 0.0
      %1167 = vmatpush1.msra.mxu0 0.0
      %1168 = vmatprep.subr.mxu0 0.0
      %1169 = vmatpush1.msra.mxu0 0.0
      %1170 = vmatprep.subr.mxu0 0.0
      %1171 = vmatpush1.msra.mxu0 0.0
      %1172 = vmatprep.subr.mxu0 0.0
      %1173 = vmatpush1.msra.mxu0 0.0
      %1174 = vmatprep.subr.mxu0 0.0
      %1175 = vmatpush1.msra.mxu0 0.0
      %1176 = vmatprep.subr.mxu0 0.0
      %1177 = vmatpush1.msra.mxu0 0.0
      %1178 = vmatprep.subr.mxu0 0.0
      %1179 = vmatpush1.msra.mxu0 0.0
      %1180 = vmatprep.subr.mxu0 0.0
      %1181 = vmatpush1.msra.mxu0 0.0
      %1182 = vmatprep.subr.mxu0 0.0
      %1183 = vmatpush1.msra.mxu0 0.0
      %1184 = vmatprep.subr.mxu0 0.0
      %1185 = vmatpush1.msra.mxu0 0.0
      %1186 = vmatprep.subr.mxu0 0.0
      %1187 = vmatpush1.msra.mxu0 0.0
      %1188 = vmatprep.subr.mxu0 0.0
      %1189 = vmatpush1.msra.mxu0 0.0
      %1190 = vmatprep.subr.mxu0 0.0
      %1191 = vmatpush1.msra.mxu0 0.0
      %1192 = vmatprep.subr.mxu0 0.0
      %1193 = vmatpush1.msra.mxu0 0.0
      %1194 = vmatprep.subr.mxu0 0.0
      %1195 = vmatpush1.msra.mxu0 0.0
      %1196 = vmatprep.subr.mxu0 0.0
      %1197 = vmatpush1.msra.mxu0 0.0
      %1198 = vmatprep.subr.mxu0 0.0
      %1199 = vmatpush1.msra.mxu0 0.0
      %1200 = vmatprep.subr.mxu0 0.0
      %1201 = vmatpush1.msra.mxu0 0.0
      %1202 = vmatprep.subr.mxu0 0.0
      %1203 = vmatpush1.msra.mxu0 0.0
      %1204 = vmatprep.subr.mxu0 0.0
      %1205 = vmatpush1.msra.mxu0 0.0
      %1206 = vmatprep.subr.mxu0 0.0
      %1207 = vmatpush1.msra.mxu0 0.0
      %1208 = vmatprep.subr.mxu0 0.0
      %1209 = vmatpush1.msra.mxu0 0.0
      %1210 = vmatprep.subr.mxu0 0.0
      %1211 = vmatpush1.msra.mxu0 0.0
      %1212 = vmatprep.subr.mxu0 0.0
      %1213 = vmatpush1.msra.mxu0 0.0
      %1214 = vmatprep.subr.mxu0 0.0
      %1215 = vmatpush1.msra.mxu0 0.0
      %1216 = vmatprep.subr.mxu0 0.0
      %1217 = vmatpush1.msra.mxu0 0.0
      %1218 = vmatprep.subr.mxu0 0.0
      %1219 = vmatpush1.msra.mxu0 0.0
      %1220 = vmatprep.subr.mxu0 0.0
      %1221 = vmatpush1.msra.mxu0 0.0
      %1222 = vmatprep.subr.mxu0 0.0
      %1223 = vmatpush1.msra.mxu0 0.0
      %1224 = vmatprep.mubr.f32.mxu0 0.0
      %1225 = vmatmul.mubr.f32.gmra.mrb[0].mxu0 %v1155
      %v1226 = vpop.f32.mrb[0].mxu0
      %v1227 = vadd.f32 0.0, %v1226
      %v1228 = vpop.f32.mrb[0].mxu0
      %1229 = vmatprep.mubr.f32.mxu0 0.0
      %1230 = vmatmul.mubr.f32.gmra.mrb[0].mxu0 %v1158
      %v1231 = vpop.f32.mrb[0].mxu0
      %v1232 = vadd.f32 0.0, %v1231
      %v1233 = vpop.f32.mrb[0].mxu0
      %1234 = vdwg.mxu0
      %v1235 = vld [vmem:[#allocation7] sm:$0xff]
      %v1236 = vmul.f32 %v1105, %v1235
      %v1237 = vlaneseq
      %v1238 = vshrl.u32 %v1237, 7
      %v1239 = vsub.s32 0, %v1238
      %v1240 = vrot.slane %v1005, %v1239
      %1242 = vset.pattern.permute.xlu0 0
      %1243 = vperm.xlu0 %1242, %v1227
      %v1244 = vpop.permute.xlu0 %1243
      %v1246 = vmul.f32 %v1240, %v1244
      %v1247 = vadd.f32 %v1236, %v1246
      %1249 = vset.pattern.permute.xlu0 0
      %1250 = vperm.xlu0 %1249, %v1232
      %v1251 = vpop.permute.xlu0 %1250
      %v1253 = vmul.f32 %v1251, %v1247
      %v1254 = vsel %vm755, %v1253, 0.0
      %v1255 = vrot.slane %v1254, 4
      %v1256 = vadd.f32 %v1254, %v1255
      %v1257 = vrot.slane %v1256, 2
      %v1258 = vadd.f32 %v1256, %v1257
      %v1259 = vrot.slane %v1258, 1
      %v1260 = vadd.f32 %v1258, %v1259
      %v1261 = vmul.f32 %v1107, %v1247
      %v1262 = vlaneseq
      %v1263 = vshrl.u32 %v1262, 7
      %v1264 = vsub.s32 1, %v1263
      %v1265 = vrot.slane %v1005, %v1264
      %1266 = vset.pattern.permute.xlu0 1
      %1267 = vperm.xlu0 %1266, %v1227
      %v1268 = vpop.permute.xlu0 %1267
      %v1270 = vmul.f32 %v1265, %v1268
      %v1271 = vadd.f32 %v1261, %v1270
      %1272 = vset.pattern.permute.xlu0 1
      %1273 = vperm.xlu0 %1272, %v1232
      %v1274 = vpop.permute.xlu0 %1273
      %v1276 = vmul.f32 %v1274, %v1271
      %v1277 = vsel %vm755, %v1276, 0.0
      %v1278 = vrot.slane %v1277, 4
      %v1279 = vadd.f32 %v1277, %v1278
      %v1280 = vrot.slane %v1279, 2
      %v1281 = vadd.f32 %v1279, %v1280
      %v1282 = vrot.slane %v1281, 1
      %v1283 = vadd.f32 %v1281, %v1282
      %v1284 = vmul.f32 %v1109, %v1271
      %v1285 = vlaneseq
      %v1286 = vshrl.u32 %v1285, 7
      %v1287 = vsub.s32 2, %v1286
      %v1288 = vrot.slane %v1005, %v1287
      %1289 = vset.pattern.permute.xlu0 2
      %1290 = vperm.xlu0 %1289, %v1227
      %v1291 = vpop.permute.xlu0 %1290
      %v1293 = vmul.f32 %v1288, %v1291
      %v1294 = vadd.f32 %v1284, %v1293
      %1295 = vset.pattern.permute.xlu0 2
      %1296 = vperm.xlu0 %1295, %v1232
      %v1297 = vpop.permute.xlu0 %1296
      %v1299 = vmul.f32 %v1297, %v1294
      %v1300 = vsel %vm755, %v1299, 0.0
      %v1301 = vrot.slane %v1300, 4
      %v1302 = vadd.f32 %v1300, %v1301
      %v1303 = vrot.slane %v1302, 2
      %v1304 = vadd.f32 %v1302, %v1303
      %v1305 = vrot.slane %v1304, 1
      %v1306 = vadd.f32 %v1304, %v1305
      %v1307 = vmul.f32 %v1111, %v1294
      %v1308 = vlaneseq
      %v1309 = vshrl.u32 %v1308, 7
      %v1310 = vsub.s32 3, %v1309
      %v1311 = vrot.slane %v1005, %v1310
      %1312 = vset.pattern.permute.xlu0 3
      %1313 = vperm.xlu0 %1312, %v1227
      %v1314 = vpop.permute.xlu0 %1313
      %v1316 = vmul.f32 %v1311, %v1314
      %v1317 = vadd.f32 %v1307, %v1316
      %1318 = vset.pattern.permute.xlu0 3
      %1319 = vperm.xlu0 %1318, %v1232
      %v1320 = vpop.permute.xlu0 %1319
      %v1322 = vmul.f32 %v1320, %v1317
      %v1323 = vsel %vm755, %v1322, 0.0
      %v1324 = vrot.slane %v1323, 4
      %v1325 = vadd.f32 %v1323, %v1324
      %v1326 = vrot.slane %v1325, 2
      %v1327 = vadd.f32 %v1325, %v1326
      %v1328 = vrot.slane %v1327, 1
      %v1329 = vadd.f32 %v1327, %v1328
      %v1330 = vmul.f32 %v1113, %v1317
      %v1331 = vlaneseq
      %v1332 = vshrl.u32 %v1331, 7
      %v1333 = vsub.s32 4, %v1332
      %v1334 = vrot.slane %v1005, %v1333
      %1335 = vset.pattern.permute.xlu0 4
      %1336 = vperm.xlu0 %1335, %v1227
      %v1337 = vpop.permute.xlu0 %1336
      %v1339 = vmul.f32 %v1334, %v1337
      %v1340 = vadd.f32 %v1330, %v1339
      %1341 = vset.pattern.permute.xlu0 4
      %1342 = vperm.xlu0 %1341, %v1232
      %v1343 = vpop.permute.xlu0 %1342
      %v1345 = vmul.f32 %v1343, %v1340
      %v1346 = vsel %vm755, %v1345, 0.0
      %v1347 = vrot.slane %v1346, 4
      %v1348 = vadd.f32 %v1346, %v1347
      %v1349 = vrot.slane %v1348, 2
      %v1350 = vadd.f32 %v1348, %v1349
      %v1351 = vrot.slane %v1350, 1
      %v1352 = vadd.f32 %v1350, %v1351
      %v1353 = vmul.f32 %v1115, %v1340
      %v1354 = vlaneseq
      %v1355 = vshrl.u32 %v1354, 7
      %v1356 = vsub.s32 5, %v1355
      %v1357 = vrot.slane %v1005, %v1356
      %1358 = vset.pattern.permute.xlu0 5
      %1359 = vperm.xlu0 %1358, %v1227
      %v1360 = vpop.permute.xlu0 %1359
      %v1362 = vmul.f32 %v1357, %v1360
      %v1363 = vadd.f32 %v1353, %v1362
      %1364 = vset.pattern.permute.xlu0 5
      %1365 = vperm.xlu0 %1364, %v1232
      %v1366 = vpop.permute.xlu0 %1365
      %v1368 = vmul.f32 %v1366, %v1363
      %v1369 = vsel %vm755, %v1368, 0.0
      %v1370 = vrot.slane %v1369, 4
      %v1371 = vadd.f32 %v1369, %v1370
      %v1372 = vrot.slane %v1371, 2
      %v1373 = vadd.f32 %v1371, %v1372
      %v1374 = vrot.slane %v1373, 1
      %v1375 = vadd.f32 %v1373, %v1374
      %v1376 = vmul.f32 %v1117, %v1363
      %v1377 = vlaneseq
      %v1378 = vshrl.u32 %v1377, 7
      %v1379 = vsub.s32 6, %v1378
      %v1380 = vrot.slane %v1005, %v1379
      %1381 = vset.pattern.permute.xlu0 6
      %1382 = vperm.xlu0 %1381, %v1227
      %v1383 = vpop.permute.xlu0 %1382
      %v1385 = vmul.f32 %v1380, %v1383
      %v1386 = vadd.f32 %v1376, %v1385
      %1387 = vset.pattern.permute.xlu0 6
      %1388 = vperm.xlu0 %1387, %v1232
      %v1389 = vpop.permute.xlu0 %1388
      %v1391 = vmul.f32 %v1389, %v1386
      %v1392 = vsel %vm755, %v1391, 0.0
      %v1393 = vrot.slane %v1392, 4
      %v1394 = vadd.f32 %v1392, %v1393
      %v1395 = vrot.slane %v1394, 2
      %v1396 = vadd.f32 %v1394, %v1395
      %v1397 = vrot.slane %v1396, 1
      %v1398 = vadd.f32 %v1396, %v1397
      %v1399 = vmul.f32 %v1119, %v1386
      %v1400 = vlaneseq
      %v1401 = vshrl.u32 %v1400, 7
      %v1402 = vsub.s32 7, %v1401
      %v1403 = vrot.slane %v1005, %v1402
      %1404 = vset.pattern.permute.xlu0 7
      %1405 = vperm.xlu0 %1404, %v1227
      %v1406 = vpop.permute.xlu0 %1405
      %v1408 = vmul.f32 %v1403, %v1406
      %v1409 = vadd.f32 %v1399, %v1408
      %1410 = vset.pattern.permute.xlu0 7
      %1411 = vperm.xlu0 %1410, %v1232
      %v1412 = vpop.permute.xlu0 %1411
      %v1414 = vmul.f32 %v1412, %v1409
      %v1415 = vsel %vm755, %v1414, 0.0
      %v1416 = vrot.slane %v1415, 4
      %v1417 = vadd.f32 %v1415, %v1416
      %v1418 = vrot.slane %v1417, 2
      %v1419 = vadd.f32 %v1417, %v1418
      %v1420 = vrot.slane %v1419, 1
      %v1421 = vadd.f32 %v1419, %v1420
      %1422 = vst.msk [vmem:[#allocation7] sm:$0xff] %vm755, %v1409
      %v1423 = vsel %vm874, %v1260, %v1283
      %vm1424 = vcmask 1041408
      %v1425 = vsel %vm1424, %v1423, %v1306
      %vm1426 = vcmask 1042432
      %v1427 = vsel %vm1426, %v1425, %v1329
      %vm1428 = vcmask 1043456
      %v1429 = vsel %vm1428, %v1427, %v1352
      %vm1430 = vcmask 1044480
      %v1431 = vsel %vm1430, %v1429, %v1375
      %vm1432 = vcmask 1045504
      %v1433 = vsel %vm1432, %v1431, %v1398
      %vm1434 = vcmask 1046528
      %v1435 = vsel %vm1434, %v1433, %v1421
      %1436 = vst.msk [vmem:[#allocation6] sm:$0xff] %vm755, %v1435
      %v1437 = vld [vmem:[%s6] sm:$0xf]
      %v1438 = vld [vmem:[%s6 + $0x4] sm:$0xf]
      %v1439 = vld [vmem:[%s6 + $0x8] sm:$0xf]
      %v1440 = vld [vmem:[%s6 + $0xc] sm:$0xf]
      %v1445 = vunpack.c.l.b16 %v1437
      %v1446 = vunpack.c.l.b16 %v1438
      %v1447 = vunpack.c.l.b16 %v1439
      %v1448 = vunpack.c.l.b16 %v1440
      %v1449 = vpack.c.b16 %v1446, %v1445
      %v1450 = vpack.c.b16 %v1448, %v1447
      %1453 = vmatprep.subr.bf16.mxu0 0
      %1454 = vmatpush1.bf16.msra.mxu0 %v1449
      %1455 = vmatprep.subr.bf16.mxu0 0
      %1456 = vmatpush1.bf16.msra.mxu0 %v1450
      %1457 = vmatprep.subr.bf16.mxu0 0
      %1458 = vmatpush1.bf16.msra.mxu0 0
      %1459 = vmatprep.subr.bf16.mxu0 0
      %1460 = vmatpush1.bf16.msra.mxu0 0
      %1461 = vmatprep.subr.bf16.mxu0 0
      %1462 = vmatpush1.bf16.msra.mxu0 0
      %1463 = vmatprep.subr.bf16.mxu0 0
      %1464 = vmatpush1.bf16.msra.mxu0 0
      %1465 = vmatprep.subr.bf16.mxu0 0
      %1466 = vmatpush1.bf16.msra.mxu0 0
      %1467 = vmatprep.subr.bf16.mxu0 0
      %1468 = vmatpush1.bf16.msra.mxu0 0
      %1469 = vmatprep.subr.bf16.mxu0 0
      %1470 = vmatpush1.bf16.msra.mxu0 0
      %1471 = vmatprep.subr.bf16.mxu0 0
      %1472 = vmatpush1.bf16.msra.mxu0 0
      %1473 = vmatprep.subr.bf16.mxu0 0
      %1474 = vmatpush1.bf16.msra.mxu0 0
      %1475 = vmatprep.subr.bf16.mxu0 0
      %1476 = vmatpush1.bf16.msra.mxu0 0
      %1477 = vmatprep.subr.bf16.mxu0 0
      %1478 = vmatpush1.bf16.msra.mxu0 0
      %1479 = vmatprep.subr.bf16.mxu0 0
      %1480 = vmatpush1.bf16.msra.mxu0 0
      %1481 = vmatprep.subr.bf16.mxu0 0
      %1482 = vmatpush1.bf16.msra.mxu0 0
      %1483 = vmatprep.subr.bf16.mxu0 0
      %1484 = vmatpush1.bf16.msra.mxu0 0
      %1485 = vmatprep.mubr.bf16.mxu0 0
      %1486 = vmatmul.mubr.bf16.gmra.mrb[0].mxu0 %v713
      %v1487 = vpop.f32.mrb[0].mxu0
      %v1488 = vadd.f32 0.0, %v1487
      %v1489 = vpop.f32.mrb[0].mxu0
      %v1490 = vpop.f32.mrb[0].mxu0
      %v1491 = vpop.f32.mrb[0].mxu0
      %1492 = vdwg.mxu0
      %v1493 = vld [vmem:[#allocation6] sm:$0xff]
      %v1494 = vld [vmem:[#allocation3] sm:$0xff]
      %v1495 = vld [vmem:[%s14] sm:$0x1]
      %v1497 = vlaneseq
      %v1498 = vshrl.u32 %v1497, 7
      %v1499 = vsub.s32 0, %v1498
      %v1500 = vrot.slane %v1495, %v1499
      %v1502 = vmul.f32 %v1494, %v1500
      %v1503 = vadd.f32 %v1493, %v1502
      %v1504 = vxor.u32 %v1488, 2147483648
      %v1505 = vmul.f32 %v1504, 1.442695
      %v1506 = vpow.pop %v1505
      %v1507 = vadd.f32 %v1506, 1.0
      %v1508 = vrcp.pop %v1507
      %v1509 = vmul.f32 1.0, %v1508
      %v1510 = vmul.f32 %v1488, %v1509
      %v1511 = vmul.f32 %v1503, %v1510
      %v1512 = vpack.c.bf16 %v1511, %v1511
      %v1513 = vld [vmem:[%s15] sm:$0xf]
      %v1514 = vld [vmem:[%s15 + $0x4] sm:$0xf]
      %v1515 = vld [vmem:[%s15 + $0x8] sm:$0xf]
      %v1516 = vld [vmem:[%s15 + $0xc] sm:$0xf]
      %v1517 = vld [vmem:[%s15 + $0x10] sm:$0xf]
      %v1518 = vld [vmem:[%s15 + $0x14] sm:$0xf]
      %v1519 = vld [vmem:[%s15 + $0x18] sm:$0xf]
      %v1520 = vld [vmem:[%s15 + $0x1c] sm:$0xf]
      %v1529 = vunpack.c.l.b16 %v1513
      %v1530 = vunpack.c.l.b16 %v1514
      %v1531 = vunpack.c.l.b16 %v1515
      %v1532 = vunpack.c.l.b16 %v1516
      %v1533 = vunpack.c.l.b16 %v1517
      %v1534 = vunpack.c.l.b16 %v1518
      %v1535 = vunpack.c.l.b16 %v1519
      %v1536 = vunpack.c.l.b16 %v1520
      %v1537 = vpack.c.b16 %v1530, %v1529
      %v1538 = vpack.c.b16 %v1532, %v1531
      %v1539 = vpack.c.b16 %v1534, %v1533
      %v1540 = vpack.c.b16 %v1536, %v1535
      %v1546 = vsel %vm755, %v1512, 0
      %1548 = vmatprep.subr.bf16.mxu0 0
      %1549 = vmatpush1.bf16.msra.mxu0 %v1537
      %1550 = vmatprep.subr.bf16.mxu0 0
      %1551 = vmatpush1.bf16.msra.mxu0 %v1538
      %1552 = vmatprep.subr.bf16.mxu0 0
      %1553 = vmatpush1.bf16.msra.mxu0 %v1539
      %1554 = vmatprep.subr.bf16.mxu0 0
      %1555 = vmatpush1.bf16.msra.mxu0 %v1540
      %1556 = vmatprep.subr.bf16.mxu0 0
      %1557 = vmatpush1.bf16.msra.mxu0 0
      %1558 = vmatprep.subr.bf16.mxu0 0
      %1559 = vmatpush1.bf16.msra.mxu0 0
      %1560 = vmatprep.subr.bf16.mxu0 0
      %1561 = vmatpush1.bf16.msra.mxu0 0
      %1562 = vmatprep.subr.bf16.mxu0 0
      %1563 = vmatpush1.bf16.msra.mxu0 0
      %1564 = vmatprep.subr.bf16.mxu0 0
      %1565 = vmatpush1.bf16.msra.mxu0 0
      %1566 = vmatprep.subr.bf16.mxu0 0
      %1567 = vmatpush1.bf16.msra.mxu0 0
      %1568 = vmatprep.subr.bf16.mxu0 0
      %1569 = vmatpush1.bf16.msra.mxu0 0
      %1570 = vmatprep.subr.bf16.mxu0 0
      %1571 = vmatpush1.bf16.msra.mxu0 0
      %1572 = vmatprep.subr.bf16.mxu0 0
      %1573 = vmatpush1.bf16.msra.mxu0 0
      %1574 = vmatprep.subr.bf16.mxu0 0
      %1575 = vmatpush1.bf16.msra.mxu0 0
      %1576 = vmatprep.subr.bf16.mxu0 0
      %1577 = vmatpush1.bf16.msra.mxu0 0
      %1578 = vmatprep.subr.bf16.mxu0 0
      %1579 = vmatpush1.bf16.msra.mxu0 0
      %1580 = vmatprep.mubr.bf16.mxu0 0
      %1581 = vmatmul.mubr.bf16.gmra.mrb[0].mxu0 %v1546
      %v1582 = vpop.f32.mrb[0].mxu0
      %v1583 = vadd.f32 0.0, %v1582
      %v1584 = vpop.f32.mrb[0].mxu0
      %v1585 = vpop.f32.mrb[0].mxu0
      %v1586 = vpop.f32.mrb[0].mxu0
      %1587 = vdwg.mxu0
      %1588 = vst.msk [vmem:[%s642] sm:$0xff] %vm661, %v1583
      %p1589 = scmp.lt.s32.totalorder %s33, 1
      %s1590 = scalar_select %p1589, %s33, 1
      %p1591 = scmp.lt.s32.totalorder %s34, 0
      %s1592 = scalar_select %p1591, %s34, 0
      %s1593 = sadd.s32 %s1592, %s1590
      %s1594 = smul.addr %s1593, 8
      %s1595 = scalar_lea.vmem %s16, %s1594
      %p1596 = scmp.lt.s32.totalorder %s33, 1
      %s1597 = scalar_select %p1596, %s33, 1
      %p1598 = scmp.lt.s32.totalorder %s34, 0
      %s1599 = scalar_select %p1598, %s34, 0
      %s1600 = sadd.s32 %s1599, %s1597
      %s1601 = smul.addr %s1600, 8
      %s1602 = scalar_lea.vmem %s17, %s1601
      // Predicated region
      $region89: #{mixer_ts_decoder_forward.3} parent=83 // pred_check
        %p1603 = pneg %p418
      $region90: #{mixer_ts_decoder_forward.3} parent=83 // pred_check_branch
        %1605 = sbr.rel (%p1603) target = $region92
      $region91: #{mixer_ts_decoder_forward.3} parent=83 // pred_region
        _
      $region92: #{mixer_ts_decoder_forward.3} parent=83 // pred_fallthru
        _
      // Predicated region
      $region93: #{mixer_ts_decoder_forward.3} parent=83 // pred_check
        %p1606 = pneg %p446
      $region94: #{mixer_ts_decoder_forward.3} parent=83 // pred_check_branch
        %1608 = sbr.rel (%p1606) target = $region96
      $region95: #{mixer_ts_decoder_forward.3} parent=83 // pred_region
        _
      $region96: #{mixer_ts_decoder_forward.3} parent=83 // pred_fallthru
        _
    $region84: #{mixer_ts_decoder_forward.3} parent=5 // pred_fallthru
      _
    %p1609 = scmp.le.s32.totalorder 2, %s24
    // Predicated region
    $region97: #{mixer_ts_decoder_forward.3} parent=5 // pred_check
      %p1610 = pneg %p1609
    $region98: #{mixer_ts_decoder_forward.3} parent=5 // pred_check_branch
      %1612 = sbr.rel (%p1610) target = $region100
    $region99: #{mixer_ts_decoder_forward.3} parent=5 // pred_region
      %s1613 = ssub.s32 %s24, 2
      // Predicated region
      $region101: #{mixer_ts_decoder_forward.3} parent=99 // pred_check
        %p1614 = pneg %p424
      $region102: #{mixer_ts_decoder_forward.3} parent=99 // pred_check_branch
        %1616 = sbr.rel (%p1614) target = $region104
      $region103: #{mixer_ts_decoder_forward.3} parent=99 // pred_region
        %p1617 = scmp.lt.s32.totalorder %s35, 1
        %s1618 = scalar_select %p1617, %s35, 1
        %p1619 = scmp.lt.s32.totalorder %s36, 0
        %s1620 = scalar_select %p1619, %s36, 0
        %s1621 = sadd.s32 %s1620, %s1618
        %s1622 = smul.addr %s1621, 8
        %s1623 = scalar_lea.vmem %s16, %s1622
      $region104: #{mixer_ts_decoder_forward.3} parent=99 // pred_fallthru
        _
      // Predicated region
      $region105: #{mixer_ts_decoder_forward.3} parent=99 // pred_check
        %p1624 = pneg %p452
      $region106: #{mixer_ts_decoder_forward.3} parent=99 // pred_check_branch
        %1626 = sbr.rel (%p1624) target = $region108
      $region107: #{mixer_ts_decoder_forward.3} parent=99 // pred_region
        %p1627 = scmp.lt.s32.totalorder %s35, 1
        %s1628 = scalar_select %p1627, %s35, 1
        %p1629 = scmp.lt.s32.totalorder %s36, 0
        %s1630 = scalar_select %p1629, %s36, 0
        %s1631 = sadd.s32 %s1630, %s1628
        %s1632 = smul.addr %s1631, 8
        %s1633 = scalar_lea.vmem %s17, %s1632
      $region108: #{mixer_ts_decoder_forward.3} parent=99 // pred_fallthru
        _
    $region100: #{mixer_ts_decoder_forward.3} parent=5 // pred_fallthru
      _
  $region6: #{mixer_ts_decoder_forward.3} parent=0 // loop_footer
    %s28 = sadd.s32 1, %s24
  $region7: #{mixer_ts_decoder_forward.3} parent=0 // loop_footer_branch
    %23 = sbr.rel target = $region3
  $region8: #{mixer_ts_decoder_forward.3} parent=0 // loop_exit
    _

</llo_original>
